<compile_context>
chip_gen: v6e
topology: v6e:2x2x1
jax: 0.10.0
libtpu: 0.0.40
codegen_flags: <defaults>
</compile_context>

<pallas_src>
import functools

import jax
import jax.numpy as jnp
from jax.experimental import pallas as pl
from jax.experimental.pallas import tpu as pltpu


TM = 256   # row tile of A / H (256-multiple for v6e/v7x MXU width)


def _round_up(x, m):
    return (x + m - 1) // m * m


# --------------------------- fused forward kernel -------------------------- #
# grid = (Np // TM,), axis "arbitrary" (sequential):
#   step 0      : XW = X @ W1 into resident VMEM scratch, zero pooled accumulator
#   every step  : H_i = leaky_relu(A[i-strip] @ XW + b1); pooled += P[:, i-strip] @ H_i
#   last step   : logits = pooled @ W2 + b2 ; out = log_softmax(logits)

def fused_gcn_kernel(x_ref, w1_ref, a_ref, b1_ref, p_ref, w2_ref, b2_ref,
                     o_ref, xw_ref, acc_ref, *, valid_c):
    i = pl.program_id(0)

    @pl.when(i == 0)
    def _():
        # XW computed once, kept resident in VMEM (bf16) for all row strips.
        xw_ref[...] = jnp.dot(
            x_ref[...], w1_ref[...], preferred_element_type=jnp.float32
        ).astype(xw_ref.dtype)
        acc_ref[...] = jnp.zeros_like(acc_ref)

    # H row strip: leaky_relu(A[i] @ XW + b1), bf16 MXU inputs, f32 accumulate.
    h = jnp.dot(a_ref[...], xw_ref[...], preferred_element_type=jnp.float32)
    h = h + b1_ref[...]
    h = jnp.where(h >= 0.0, h, 0.01 * h)              # leaky_relu, slope 0.01

    # pooled += P[:, i-strip] @ H_strip   (bf16 MXU inputs, f32 accumulator)
    acc_ref[...] += jnp.dot(
        p_ref[...], h.astype(jnp.bfloat16), preferred_element_type=jnp.float32
    )

    @pl.when(i == pl.num_programs(0) - 1)
    def _():
        logits = jnp.dot(
            acc_ref[...], w2_ref[...], preferred_element_type=jnp.float32
        ) + b2_ref[...]
        # Mask padded class lanes with a large finite negative so padded graph
        # rows never produce NaN and valid rows are unaffected.
        lane = jax.lax.broadcasted_iota(jnp.int32, logits.shape, 1)
        logits = jnp.where(lane < valid_c, logits, -1e30)
        m = jnp.max(logits, axis=1, keepdims=True)
        z = logits - m
        lse = jnp.log(jnp.sum(jnp.exp(z), axis=1, keepdims=True))
        o_ref[...] = (z - lse).astype(o_ref.dtype)


# ------------------------------ Python wrapper ----------------------------- #

def gcn_forward(a_norm, x, w1, b1, p_pool, w2, b2):
    N, F = x.shape
    H = w1.shape[1]
    G = p_pool.shape[0]
    C = w2.shape[1]

    Np = _round_up(N, TM)
    Fp = _round_up(F, 128)
    Hp = _round_up(H, 128)
    Cp = _round_up(C, 128)
    Gp = _round_up(G, 8)

    def pad2(arr, r, c, dtype):
        out = jnp.pad(arr, ((0, r - arr.shape[0]), (0, c - arr.shape[1])))
        return out.astype(dtype)

    # bf16 MXU inputs on the big matmuls; f32 accumulation inside the kernel.
    # (Keeping A/X/XW in bf16 costs ~3 significant digits vs the f32 PyTorch
    #  reference — acceptable for inference; switch A/X to f32 if tighter parity
    #  is required.)
    a_p = pad2(a_norm, Np, Np, jnp.bfloat16)
    x_p = pad2(x, Np, Fp, jnp.bfloat16)
    w1_p = pad2(w1, Fp, Hp, jnp.bfloat16)
    b1_p = pad2(b1, 1, Hp, jnp.float32)
    p_p = pad2(p_pool, Gp, Np, jnp.bfloat16)
    w2_p = pad2(w2, Hp, Cp, jnp.float32)
    b2_p = pad2(b2, 1, Cp, jnp.float32)

    n_steps = Np // TM

    flops = (2 * Np * Fp * Hp          # XW
             + 2 * Np * Np * Hp        # A @ XW
             + 2 * Gp * Np * Hp        # P @ H
             + 2 * Gp * Hp * Cp)       # pooled @ W2
    bytes_accessed = (a_p.size * 2 + x_p.size * 2 + w1_p.size * 2
                      + p_p.size * 2 + w2_p.size * 4
                      + b1_p.size * 4 + b2_p.size * 4 + Gp * Cp * 4)

    out_p = pl.pallas_call(
        functools.partial(fused_gcn_kernel, valid_c=C),
        out_shape=jax.ShapeDtypeStruct((Gp, Cp), jnp.float32),
        grid=(n_steps,),
        in_specs=[
            pl.BlockSpec((Np, Fp), lambda i: (0, 0)),   # X (resident)
            pl.BlockSpec((Fp, Hp), lambda i: (0, 0)),   # W1 (resident)
            pl.BlockSpec((TM, Np), lambda i: (i, 0)),   # A row strip (streamed)
            pl.BlockSpec((1, Hp), lambda i: (0, 0)),    # b1
            pl.BlockSpec((Gp, TM), lambda i: (0, i)),   # P column strip (streamed)
            pl.BlockSpec((Hp, Cp), lambda i: (0, 0)),   # W2
            pl.BlockSpec((1, Cp), lambda i: (0, 0)),    # b2
        ],
        out_specs=pl.BlockSpec((Gp, Cp), lambda i: (0, 0)),
        scratch_shapes=[
            pltpu.VMEM((Np, Hp), jnp.bfloat16),         # resident XW
            pltpu.VMEM((Gp, Hp), jnp.float32),          # pooled accumulator
        ],
        compiler_params=pltpu.CompilerParams(
            dimension_semantics=("arbitrary",)),
        cost_estimate=pl.CostEstimate(
            flops=int(flops), transcendentals=int(Gp * Cp),
            bytes_accessed=int(bytes_accessed)),
    )(x_p, w1_p, a_p, b1_p, p_p, w2_p, b2_p)

    return out_p[:G, :C]


# ------------------------------ JAX graph glue ----------------------------- #

def build_normalized_adjacency(edge_index, edge_weight, num_nodes):
    """gcn_norm with add_self_loops=False: A_hat[col, row] = d[row]^-1/2 * w * d[col]^-1/2."""
    row, col = edge_index[0], edge_index[1]
    deg = jnp.zeros((num_nodes,), jnp.float32).at[col].add(edge_weight)
    dinv = jnp.where(deg > 0.0, jax.lax.rsqrt(deg), 0.0)
    norm = dinv[row] * edge_weight * dinv[col]
    a = jnp.zeros((num_nodes, num_nodes), jnp.float32).at[col, row].add(norm)
    return a


def build_mean_pool_matrix(batch, num_graphs):
    onehot = (batch[None, :] == jnp.arange(num_graphs)[:, None]).astype(jnp.float32)
    counts = jnp.maximum(onehot.sum(axis=1, keepdims=True), 1.0)
    return onehot / counts


def reference_forward(a_norm, x, w1, b1, p_pool, w2, b2):
    h = a_norm @ (x @ w1) + b1
    h = jnp.where(h >= 0.0, h, 0.01 * h)
    pooled = p_pool @ h
    logits = pooled @ w2 + b2
    return jax.nn.log_softmax(logits, axis=1)


# --------------------------------- Driver ---------------------------------- #

if __name__ == "__main__":
    key = jax.random.PRNGKey(0)
    kx, ke, kw1, kb1, kw2, kb2 = jax.random.split(key, 6)

    # small-but-non-toy shapes so the fused grid has multiple row strips
    N, F, HID, C, G, E = 300, 8, 32, 4, 2, 1200

    x = jax.random.normal(kx, (N, F), jnp.float32)

    src = jax.random.randint(ke, (E,), 0, N)
    dst = jax.random.randint(jax.random.fold_in(ke, 1), (E,), 0, N)
    edge_index = jnp.stack([src, dst], axis=0)
    edge_weight = jax.random.uniform(jax.random.fold_in(ke, 2), (E,),
                                     jnp.float32, minval=0.1, maxval=1.0)

    # batch assignment: first half of nodes -> graph 0, second half -> graph 1
    batch = jnp.concatenate([jnp.zeros((N // 2,), jnp.int32),
                             jnp.ones((N - N // 2,), jnp.int32)])

    # GCNConv weight (F, HID) + bias, Linear (HID, C) + bias
    w1 = jax.random.normal(kw1, (F, HID), jnp.float32) * (1.0 / jnp.sqrt(F))
    b1 = jax.random.normal(kb1, (1, HID), jnp.float32) * 0.01
    w2 = jax.random.normal(kw2, (HID, C), jnp.float32) * (1.0 / jnp.sqrt(HID))
    b2 = jax.random.normal(kb2, (1, C), jnp.float32) * 0.01

    a_norm = build_normalized_adjacency(edge_index, edge_weight, N)
    p_pool = build_mean_pool_matrix(batch, G)

    out = gcn_forward(a_norm, x, w1, b1, p_pool, w2, b2)
    out = jax.block_until_ready(out)

    # sanity: shape, rows exp-sum to 1, and close to the f32 JAX reference
    assert out.shape == (G, C)
    assert jnp.allclose(jnp.exp(out).sum(axis=1), 1.0, atol=1e-5)
    ref = reference_forward(a_norm, x, w1, b1, p_pool, w2, b2)
    assert jnp.allclose(out, ref, atol=1e-1), (out, ref)

    # TODO(synk): dropout is identity (inference mode); training-mode dropout would
    # need pltpu.prng_seed / pltpu.prng_random_bits inside the kernel.
    print("KERNEL_OK")
</pallas_src>

<mosaic_0001>
module attributes {stable_mosaic.version = 11 : i64} {
  func.func @fused_gcn_kernel(%arg0: i32, %arg1: memref<512x128xbf16, #tpu.memory_space<vmem>>, %arg2: memref<128x128xbf16, #tpu.memory_space<vmem>>, %arg3: memref<256x512xbf16, #tpu.memory_space<vmem>>, %arg4: memref<1x128xf32, #tpu.memory_space<vmem>>, %arg5: memref<8x256xbf16, #tpu.memory_space<vmem>>, %arg6: memref<128x128xf32, #tpu.memory_space<vmem>>, %arg7: memref<1x128xf32, #tpu.memory_space<vmem>>, %arg8: memref<8x128xf32, #tpu.memory_space<vmem>>, %arg9: memref<512x128xbf16, #tpu.memory_space<vmem>>, %arg10: memref<8x128xf32, #tpu.memory_space<vmem>>) attributes {dimension_semantics = [#tpu.dimension_semantics<arbitrary>], iteration_bounds = array<i64: 2>, scalar_prefetch = 0 : i64, scratch_operands = 2 : i64, tpu.core_type = #tpu.core_type<tc>, window_params = [{pipeline_mode = #tpu.pipeline_mode<synchronous>, transform_indices = @transform_0, window_bounds = array<i64: 512, 128>}, {pipeline_mode = #tpu.pipeline_mode<synchronous>, transform_indices = @transform_1, window_bounds = array<i64: 128, 128>}, {transform_indices = @transform_2, window_bounds = array<i64: 256, 512>}, {pipeline_mode = #tpu.pipeline_mode<synchronous>, transform_indices = @transform_3, window_bounds = array<i64: 1, 128>}, {transform_indices = @transform_4, window_bounds = array<i64: 8, 256>}, {pipeline_mode = #tpu.pipeline_mode<synchronous>, transform_indices = @transform_5, window_bounds = array<i64: 128, 128>}, {pipeline_mode = #tpu.pipeline_mode<synchronous>, transform_indices = @transform_6, window_bounds = array<i64: 1, 128>}, {pipeline_mode = #tpu.pipeline_mode<synchronous>, transform_indices = @transform_7, window_bounds = array<i64: 8, 128>}]} {
    %c0_i32 = arith.constant 0 : i32
    %0 = arith.cmpi eq, %arg0, %c0_i32 : i32
    %1 = arith.extui %0 : i1 to i32
    %c0_i32_0 = arith.constant 0 : i32
    %2 = arith.cmpi ne, %1, %c0_i32_0 : i32
    scf.if %2 {
      %c0_16 = arith.constant 0 : index
      %c0_17 = arith.constant 0 : index
      %23 = vector.load %arg1[%c0_16, %c0_17] : memref<512x128xbf16, #tpu.memory_space<vmem>>, vector<512x128xbf16>
      %c0_18 = arith.constant 0 : index
      %c0_19 = arith.constant 0 : index
      %24 = vector.load %arg2[%c0_18, %c0_19] : memref<128x128xbf16, #tpu.memory_space<vmem>>, vector<128x128xbf16>
      %cst_20 = arith.constant dense<0.000000e+00> : vector<512x128xf32>
      %25 = tpu.matmul %23, %24, %cst_20 {dimension_numbers = #tpu.dot_dimension_numbers<[1], [0], [0], [1], [0, 0, 1, 1], [], []>} : vector<512x128xbf16>, vector<128x128xbf16>, vector<512x128xf32> -> vector<512x128xf32>
      %26 = arith.truncf %25 : vector<512x128xf32> to vector<512x128xbf16>
      %c0_21 = arith.constant 0 : index
      %c0_22 = arith.constant 0 : index
      %27 = vector.load %arg9[%c0_21, %c0_22] : memref<512x128xbf16, #tpu.memory_space<vmem>>, vector<512x128xbf16>
      tpu.vector_store %arg9[%c0_21, %c0_22], %26 {strides = array<i32>} : memref<512x128xbf16, #tpu.memory_space<vmem>>, vector<512x128xbf16>,
      %cst_23 = arith.constant 0.000000e+00 : f32
      %28 = vector.broadcast %cst_23 : f32 to vector<8x128xf32>
      %c0_24 = arith.constant 0 : index
      %c0_25 = arith.constant 0 : index
      %29 = vector.load %arg10[%c0_24, %c0_25] : memref<8x128xf32, #tpu.memory_space<vmem>>, vector<8x128xf32>
      tpu.vector_store %arg10[%c0_24, %c0_25], %28 {strides = array<i32>} : memref<8x128xf32, #tpu.memory_space<vmem>>, vector<8x128xf32>,
    } else {
    }
    %c0 = arith.constant 0 : index
    %c0_1 = arith.constant 0 : index
    %3 = vector.load %arg3[%c0, %c0_1] : memref<256x512xbf16, #tpu.memory_space<vmem>>, vector<256x512xbf16>
    %c0_2 = arith.constant 0 : index
    %c0_3 = arith.constant 0 : index
    %4 = vector.load %arg9[%c0_2, %c0_3] : memref<512x128xbf16, #tpu.memory_space<vmem>>, vector<512x128xbf16>
    %cst = arith.constant dense<0.000000e+00> : vector<256x128xf32>
    %5 = tpu.matmul %3, %4, %cst {dimension_numbers = #tpu.dot_dimension_numbers<[1], [0], [0], [1], [0, 0, 1, 1], [], []>} : vector<256x512xbf16>, vector<512x128xbf16>, vector<256x128xf32> -> vector<256x128xf32>
    %c0_4 = arith.constant 0 : index
    %c0_5 = arith.constant 0 : index
    %6 = vector.load %arg4[%c0_4, %c0_5] : memref<1x128xf32, #tpu.memory_space<vmem>>, vector<1x128xf32>
    %7 = vector.broadcast %6 : vector<1x128xf32> to vector<256x128xf32>
    %8 = arith.addf %5, %7 : vector<256x128xf32>
    %cst_6 = arith.constant 0.000000e+00 : f32
    %9 = vector.broadcast %cst_6 : f32 to vector<256x128xf32>
    %10 = arith.cmpf oge, %8, %9 : vector<256x128xf32>
    %cst_7 = arith.constant 0.00999999977 : f32
    %11 = vector.broadcast %cst_7 : f32 to vector<256x128xf32>
    %12 = arith.mulf %11, %8 : vector<256x128xf32>
    %13 = arith.select %10, %8, %12 : vector<256x128xi1>, vector<256x128xf32>
    %c0_8 = arith.constant 0 : index
    %c0_9 = arith.constant 0 : index
    %14 = vector.load %arg10[%c0_8, %c0_9] : memref<8x128xf32, #tpu.memory_space<vmem>>, vector<8x128xf32>
    %c0_10 = arith.constant 0 : index
    %c0_11 = arith.constant 0 : index
    %15 = vector.load %arg5[%c0_10, %c0_11] : memref<8x256xbf16, #tpu.memory_space<vmem>>, vector<8x256xbf16>
    %16 = arith.truncf %13 : vector<256x128xf32> to vector<256x128xbf16>
    %cst_12 = arith.constant dense<0.000000e+00> : vector<8x128xf32>
    %17 = tpu.matmul %15, %16, %cst_12 {dimension_numbers = #tpu.dot_dimension_numbers<[1], [0], [0], [1], [0, 0, 1, 1], [], []>} : vector<8x256xbf16>, vector<256x128xbf16>, vector<8x128xf32> -> vector<8x128xf32>
    %18 = arith.addf %14, %17 : vector<8x128xf32>
    %c0_13 = arith.constant 0 : index
    %c0_14 = arith.constant 0 : index
    %19 = vector.load %arg10[%c0_13, %c0_14] : memref<8x128xf32, #tpu.memory_space<vmem>>, vector<8x128xf32>
    tpu.vector_store %arg10[%c0_13, %c0_14], %18 {strides = array<i32>} : memref<8x128xf32, #tpu.memory_space<vmem>>, vector<8x128xf32>,
    %c1_i32 = arith.constant 1 : i32
    %20 = arith.cmpi eq, %arg0, %c1_i32 : i32
    %21 = arith.extui %20 : i1 to i32
    %c0_i32_15 = arith.constant 0 : i32
    %22 = arith.cmpi ne, %21, %c0_i32_15 : i32
    scf.if %22 {
      %c0_16 = arith.constant 0 : index
      %c0_17 = arith.constant 0 : index
      %23 = vector.load %arg10[%c0_16, %c0_17] : memref<8x128xf32, #tpu.memory_space<vmem>>, vector<8x128xf32>
      %c0_18 = arith.constant 0 : index
      %c0_19 = arith.constant 0 : index
      %24 = vector.load %arg6[%c0_18, %c0_19] : memref<128x128xf32, #tpu.memory_space<vmem>>, vector<128x128xf32>
      %cst_20 = arith.constant dense<0.000000e+00> : vector<8x128xf32>
      %25 = tpu.matmul %23, %24, %cst_20 {dimension_numbers = #tpu.dot_dimension_numbers<[1], [0], [0], [1], [0, 0, 1, 1], [], []>} : vector<8x128xf32>, vector<128x128xf32>, vector<8x128xf32> -> vector<8x128xf32>
      %c0_21 = arith.constant 0 : index
      %c0_22 = arith.constant 0 : index
      %26 = vector.load %arg7[%c0_21, %c0_22] : memref<1x128xf32, #tpu.memory_space<vmem>>, vector<1x128xf32>
      %27 = vector.broadcast %26 : vector<1x128xf32> to vector<8x128xf32>
      %28 = arith.addf %25, %27 : vector<8x128xf32>
      %29 = tpu.iota {dimensions = array<i32: 1>} : vector<8x128xi32>
      %c4_i32 = arith.constant 4 : i32
      %30 = vector.broadcast %c4_i32 : i32 to vector<8x128xi32>
      %31 = arith.cmpi slt, %29, %30 : vector<8x128xi32>
      %cst_23 = arith.constant -1.000000e+30 : f32
      %32 = vector.broadcast %cst_23 : f32 to vector<8x128xf32>
      %33 = arith.select %31, %28, %32 : vector<8x128xi1>, vector<8x128xf32>
      %cst_24 = arith.constant dense<0xFF800000> : vector<8xf32>
      %34 = vector.multi_reduction <maximumf>, %33, %cst_24 [1] : vector<8x128xf32> to vector<8xf32>
      %35 = vector.shape_cast %34 : vector<8xf32> to vector<8x1xf32>
      %36 = vector.broadcast %35 : vector<8x1xf32> to vector<8x128xf32>
      %37 = arith.subf %33, %36 : vector<8x128xf32>
      %38 = math.exp %37 : vector<8x128xf32>
      %cst_25 = arith.constant dense<0.000000e+00> : vector<8xf32>
      %39 = vector.multi_reduction <add>, %38, %cst_25 [1] : vector<8x128xf32> to vector<8xf32>
      %40 = vector.shape_cast %39 : vector<8xf32> to vector<8x1xf32>
      %41 = math.log %40 : vector<8x1xf32>
      %42 = vector.broadcast %41 : vector<8x1xf32> to vector<8x128xf32>
      %43 = arith.subf %37, %42 : vector<8x128xf32>
      %c0_26 = arith.constant 0 : index
      %c0_27 = arith.constant 0 : index
      %44 = vector.load %arg8[%c0_26, %c0_27] : memref<8x128xf32, #tpu.memory_space<vmem>>, vector<8x128xf32>
      tpu.vector_store %arg8[%c0_26, %c0_27], %43 {strides = array<i32>} : memref<8x128xf32, #tpu.memory_space<vmem>>, vector<8x128xf32>,
    } else {
    }
    return
  }
  func.func @transform_0(%arg0: i32) -> (i32, i32) {
    %c0_i32 = arith.constant 0 : i32
    %c0_i32_0 = arith.constant 0 : i32
    %c0_i32_1 = arith.constant 0 : i32
    return %c0_i32, %c0_i32_0 : i32, i32
  }
  func.func @transform_1(%arg0: i32) -> (i32, i32) {
    %c0_i32 = arith.constant 0 : i32
    %c0_i32_0 = arith.constant 0 : i32
    %c0_i32_1 = arith.constant 0 : i32
    return %c0_i32, %c0_i32_0 : i32, i32
  }
  func.func @transform_2(%arg0: i32) -> (i32, i32) {
    %c0_i32 = arith.constant 0 : i32
    %c0_i32_0 = arith.constant 0 : i32
    return %arg0, %c0_i32 : i32, i32
  }
  func.func @transform_3(%arg0: i32) -> (i32, i32) {
    %c0_i32 = arith.constant 0 : i32
    %c0_i32_0 = arith.constant 0 : i32
    %c0_i32_1 = arith.constant 0 : i32
    return %c0_i32, %c0_i32_0 : i32, i32
  }
  func.func @transform_4(%arg0: i32) -> (i32, i32) {
    %c0_i32 = arith.constant 0 : i32
    %c0_i32_0 = arith.constant 0 : i32
    return %c0_i32, %arg0 : i32, i32
  }
  func.func @transform_5(%arg0: i32) -> (i32, i32) {
    %c0_i32 = arith.constant 0 : i32
    %c0_i32_0 = arith.constant 0 : i32
    %c0_i32_1 = arith.constant 0 : i32
    return %c0_i32, %c0_i32_0 : i32, i32
  }
  func.func @transform_6(%arg0: i32) -> (i32, i32) {
    %c0_i32 = arith.constant 0 : i32
    %c0_i32_0 = arith.constant 0 : i32
    %c0_i32_1 = arith.constant 0 : i32
    return %c0_i32, %c0_i32_0 : i32, i32
  }
  func.func @transform_7(%arg0: i32) -> (i32, i32) {
    %c0_i32 = arith.constant 0 : i32
    %c0_i32_0 = arith.constant 0 : i32
    %c0_i32_1 = arith.constant 0 : i32
    return %c0_i32, %c0_i32_0 : i32, i32
  }
}

</mosaic_0001>

<llo_original>
// kernel: tpu_custom_call.1
$region0: #{tpu_custom_call.1}
  #allocation0 [shape = 'u32[]', space=smem, size = 0x4, offset = 0x4, fixed_abs, tag = 'smem constant byte address 0x4 - core index']
  #allocation1 [shape = 'u32[144,128]{1,0:T(1,128)}', space=vmem, size = 0x12000, scoped, tag = 'internal scratch']
  #allocation2 [shape = 'bf16[512,128]{1,0:T(8,128)(2,1)}', space=vmem, size = 0x20000, scoped, tag = 'scratch operand']
  #allocation3 [shape = 'f32[8,128]{1,0:T(8,128)}', space=vmem, size = 0x1000, scoped, tag = 'scratch operand']
  %s0 = inlined_call_operand.hbm [shape: bf16[512,128], index: 0, kind: input, shape index: {}]
  %s1 = inlined_call_operand.hbm [shape: bf16[128,128], index: 1, kind: input, shape index: {}]
  %s2 = inlined_call_operand.hbm [shape: bf16[512,512], index: 2, kind: input, shape index: {}]
  %s3 = inlined_call_operand.vmem [shape: f32[1,128], index: 3, kind: input, shape index: {}]
  %s4 = inlined_call_operand.hbm [shape: bf16[8,512], index: 4, kind: input, shape index: {}]
  %s5 = inlined_call_operand.hbm [shape: f32[128,128], index: 5, kind: input, shape index: {}]
  %s6 = inlined_call_operand.vmem [shape: f32[1,128], index: 6, kind: input, shape index: {}]
  %s7 = inlined_call_operand.hbm [shape: f32[8,128], index: 7, kind: output, shape index: {}]
  %s8 = sld [smem:[#allocation0]]
  $region89: #{tpu_custom_call.1} parent=0
    _
  %s10 = ssub.s32 1, %s8
  %s11 = scalar_select 0, %s10, %s8
  $region1: #{tpu_custom_call.1} parent=0
    #allocation4 [shape = 'u8[131072]{0}', space=vmem, size = 0x20000, scoped, tag = 'input window, operand 0, single buffered']
    #allocation5 [shape = 's32[2]{0}', space=sflag, size = 0x8, scoped, tag = 'scoped memory for tpu_custom_call.1']
    #allocation6 [shape = 's32[2]{0}', space=sflag, size = 0x8, scoped, tag = 'scoped memory for tpu_custom_call.1']
    #allocation7 [shape = 'u8[32768]{0}', space=vmem, size = 0x8000, scoped, tag = 'input window, operand 1, single buffered']
    #allocation8 [shape = 's32[1]{0}', space=sflag, size = 0x4, scoped, tag = 'scoped memory for tpu_custom_call.1']
    #allocation9 [shape = 'u8[524288]{0}', space=vmem, size = 0x80000, scoped, tag = 'input window, operand 2']
    #allocation10 [shape = 'u8[8192]{0}', space=vmem, size = 0x2000, scoped, tag = 'input window, operand 4']
    #allocation11 [shape = 'u8[65536]{0}', space=vmem, size = 0x10000, scoped, tag = 'input window, operand 5, single buffered']
    #allocation12 [shape = 'u8[4096]{0}', space=vmem, size = 0x1000, scoped, tag = 'output window, operand 0, single buffered']
    %12 = vsyncpa [#allocation5], 0
    %13 = vsyncpa [#allocation8], 0
    %14 = vsyncpa [#allocation6], 0
    loop: start=0, step=1, limit=4
    $region2: #{tpu_custom_call.1} parent=1 // loop_pre_header
      _
    $region3: #{tpu_custom_call.1} parent=1 // loop_header
      %s16 = sphi 0, %s20
      %p17 = scmp.ge.s32.totalorder %s16, 4
      %s24 = sphi 0, %s24
      %s26 = sphi 0, %s24
      %s27 = sphi 0, %s26
      %s41 = sphi 0, %s27
      %s45 = sphi 0, %s45
      %s47 = sphi 0, %s45
      %s48 = sphi 0, %s47
      %s62 = sphi 0, %s48
      %s68 = sphi 0, %s70
      %s71 = sphi 0, %s68
      %s72 = sphi 0, %s71
      %s88 = sphi 0, %s72
      %s92 = sphi 0, %s92
      %s94 = sphi 0, %s92
      %s95 = sphi 0, %s94
      %s109 = sphi 0, %s95
      %s115 = sphi 0, %s117
      %s118 = sphi 0, %s115
      %s119 = sphi 0, %s118
      %s135 = sphi 0, %s119
      %s139 = sphi 0, %s139
      %s141 = sphi 0, %s139
      %s142 = sphi 0, %s141
      %s156 = sphi 0, %s142
      %s160 = sphi 0, %s160
      %s162 = sphi 0, %s160
      %s163 = sphi 0, %s162
      %s177 = sphi 0, %s163
      %s181 = sphi 0, %s181
      %s183 = sphi 0, %s181
      %s184 = sphi 0, %s183
      %s198 = sphi 0, %s184
    $region4: #{tpu_custom_call.1} parent=1 // loop_header_branch
      %19 = sbr.rel (%p17) target = $region8
    $region5: #{tpu_custom_call.1} parent=1 // loop_body
      %s21 = ssub.s32 %s16, 1
      %s22 = ssub.s32 %s16, 2
      %s23 = sadd.s32 %s16, 1
      %s25 = sadd.s32 %s24, 1
      %p28 = scmp.eq.s32.totalorder %s16, 1
      %p29 = scmp.ne.s32.totalorder %s24, %s26
      %p30 = scmp.eq.s32.totalorder %s16, 0
      %p31 = por %p29, %p30
      %p32 = scmp.ne.s32.totalorder %s24, %s26
      %p33 = scmp.eq.s32.totalorder %s21, 1
      %p34 = por %p32, %p33
      %p35 = scmp.ne.s32.totalorder %s26, %s27
      %p36 = scmp.eq.s32.totalorder %s21, 0
      %p37 = por %p35, %p36
      %p38 = scmp.ne.s32.totalorder %s26, %s27
      %p39 = scmp.eq.s32.totalorder %s22, 1
      %p40 = por %p38, %p39
      %p42 = scmp.ne.s32.totalorder %s27, %s41
      %p43 = scmp.eq.s32.totalorder %s22, 0
      %p44 = por %p42, %p43
      %s46 = sadd.s32 %s45, 1
      %p49 = scmp.eq.s32.totalorder %s16, 1
      %p50 = scmp.ne.s32.totalorder %s45, %s47
      %p51 = scmp.eq.s32.totalorder %s16, 0
      %p52 = por %p50, %p51
      %p53 = scmp.ne.s32.totalorder %s45, %s47
      %p54 = scmp.eq.s32.totalorder %s21, 1
      %p55 = por %p53, %p54
      %p56 = scmp.ne.s32.totalorder %s47, %s48
      %p57 = scmp.eq.s32.totalorder %s21, 0
      %p58 = por %p56, %p57
      %p59 = scmp.ne.s32.totalorder %s47, %s48
      %p60 = scmp.eq.s32.totalorder %s22, 1
      %p61 = por %p59, %p60
      %p63 = scmp.ne.s32.totalorder %s48, %s62
      %p64 = scmp.eq.s32.totalorder %s22, 0
      %p65 = por %p63, %p64
      %s66 = ssub.s32 %s16, %s23
      %p67 = scmp.eq.s32.totalorder %s66, 0
      %s69 = sadd.s32 %s68, 1
      %s70 = scalar_select %p67, %s68, %s69
      %p73 = pneg %p67
      %p74 = scmp.eq.s32.totalorder %s16, 1
      %p75 = por %p73, %p74
      %p76 = scmp.ne.s32.totalorder %s68, %s71
      %p77 = scmp.eq.s32.totalorder %s16, 0
      %p78 = por %p76, %p77
      %p79 = scmp.ne.s32.totalorder %s68, %s71
      %p80 = scmp.eq.s32.totalorder %s21, 1
      %p81 = por %p79, %p80
      %p82 = scmp.ne.s32.totalorder %s71, %s72
      %p83 = scmp.eq.s32.totalorder %s21, 0
      %p84 = por %p82, %p83
      %p85 = scmp.ne.s32.totalorder %s71, %s72
      %p86 = scmp.eq.s32.totalorder %s22, 1
      %p87 = por %p85, %p86
      %p89 = scmp.ne.s32.totalorder %s72, %s88
      %p90 = scmp.eq.s32.totalorder %s22, 0
      %p91 = por %p89, %p90
      %s93 = sadd.s32 %s92, 1
      %p96 = scmp.eq.s32.totalorder %s16, 1
      %p97 = scmp.ne.s32.totalorder %s92, %s94
      %p98 = scmp.eq.s32.totalorder %s16, 0
      %p99 = por %p97, %p98
      %p100 = scmp.ne.s32.totalorder %s92, %s94
      %p101 = scmp.eq.s32.totalorder %s21, 1
      %p102 = por %p100, %p101
      %p103 = scmp.ne.s32.totalorder %s94, %s95
      %p104 = scmp.eq.s32.totalorder %s21, 0
      %p105 = por %p103, %p104
      %p106 = scmp.ne.s32.totalorder %s94, %s95
      %p107 = scmp.eq.s32.totalorder %s22, 1
      %p108 = por %p106, %p107
      %p110 = scmp.ne.s32.totalorder %s95, %s109
      %p111 = scmp.eq.s32.totalorder %s22, 0
      %p112 = por %p110, %p111
      %s113 = ssub.s32 %s16, %s23
      %p114 = scmp.eq.s32.totalorder %s113, 0
      %s116 = sadd.s32 %s115, 1
      %s117 = scalar_select %p114, %s115, %s116
      %p120 = pneg %p114
      %p121 = scmp.eq.s32.totalorder %s16, 1
      %p122 = por %p120, %p121
      %p123 = scmp.ne.s32.totalorder %s115, %s118
      %p124 = scmp.eq.s32.totalorder %s16, 0
      %p125 = por %p123, %p124
      %p126 = scmp.ne.s32.totalorder %s115, %s118
      %p127 = scmp.eq.s32.totalorder %s21, 1
      %p128 = por %p126, %p127
      %p129 = scmp.ne.s32.totalorder %s118, %s119
      %p130 = scmp.eq.s32.totalorder %s21, 0
      %p131 = por %p129, %p130
      %p132 = scmp.ne.s32.totalorder %s118, %s119
      %p133 = scmp.eq.s32.totalorder %s22, 1
      %p134 = por %p132, %p133
      %p136 = scmp.ne.s32.totalorder %s119, %s135
      %p137 = scmp.eq.s32.totalorder %s22, 0
      %p138 = por %p136, %p137
      %s140 = sadd.s32 %s139, 1
      %p143 = scmp.eq.s32.totalorder %s16, 1
      %p144 = scmp.ne.s32.totalorder %s139, %s141
      %p145 = scmp.eq.s32.totalorder %s16, 0
      %p146 = por %p144, %p145
      %p147 = scmp.ne.s32.totalorder %s139, %s141
      %p148 = scmp.eq.s32.totalorder %s21, 1
      %p149 = por %p147, %p148
      %p150 = scmp.ne.s32.totalorder %s141, %s142
      %p151 = scmp.eq.s32.totalorder %s21, 0
      %p152 = por %p150, %p151
      %p153 = scmp.ne.s32.totalorder %s141, %s142
      %p154 = scmp.eq.s32.totalorder %s22, 1
      %p155 = por %p153, %p154
      %p157 = scmp.ne.s32.totalorder %s142, %s156
      %p158 = scmp.eq.s32.totalorder %s22, 0
      %p159 = por %p157, %p158
      %s161 = sadd.s32 %s160, 1
      %p164 = scmp.eq.s32.totalorder %s16, 1
      %p165 = scmp.ne.s32.totalorder %s160, %s162
      %p166 = scmp.eq.s32.totalorder %s16, 0
      %p167 = por %p165, %p166
      %p168 = scmp.ne.s32.totalorder %s160, %s162
      %p169 = scmp.eq.s32.totalorder %s21, 1
      %p170 = por %p168, %p169
      %p171 = scmp.ne.s32.totalorder %s162, %s163
      %p172 = scmp.eq.s32.totalorder %s21, 0
      %p173 = por %p171, %p172
      %p174 = scmp.ne.s32.totalorder %s162, %s163
      %p175 = scmp.eq.s32.totalorder %s22, 1
      %p176 = por %p174, %p175
      %p178 = scmp.ne.s32.totalorder %s163, %s177
      %p179 = scmp.eq.s32.totalorder %s22, 0
      %p180 = por %p178, %p179
      %s182 = sadd.s32 %s181, 1
      %p185 = scmp.eq.s32.totalorder %s16, 1
      %p186 = scmp.ne.s32.totalorder %s181, %s183
      %p187 = scmp.eq.s32.totalorder %s16, 0
      %p188 = por %p186, %p187
      %p189 = scmp.ne.s32.totalorder %s181, %s183
      %p190 = scmp.eq.s32.totalorder %s21, 1
      %p191 = por %p189, %p190
      %p192 = scmp.ne.s32.totalorder %s183, %s184
      %p193 = scmp.eq.s32.totalorder %s21, 0
      %p194 = por %p192, %p193
      %p195 = scmp.ne.s32.totalorder %s183, %s184
      %p196 = scmp.eq.s32.totalorder %s22, 1
      %p197 = por %p195, %p196
      %p199 = scmp.ne.s32.totalorder %s184, %s198
      %p200 = scmp.eq.s32.totalorder %s22, 0
      %p201 = por %p199, %p200
      %p202 = scmp.le.s32.totalorder 1, %s16
      %p203 = scmp.lt.s32.totalorder %s16, 3
      %p204 = pnand %p202, %p203
      %p205 = pneg %p204
      // Predicated region
      $region9: #{tpu_custom_call.1} parent=5 // pred_check
        _
      $region10: #{tpu_custom_call.1} parent=5 // pred_check_branch
        %207 = sbr.rel (%p204) target = $region12
      $region11: #{tpu_custom_call.1} parent=5 // pred_region
        %s208 = ssub.s32 %s16, 1
        // Predicated region
        $region13: #{tpu_custom_call.1} parent=11 // pred_check
          %p209 = pneg %p37
        $region14: #{tpu_custom_call.1} parent=11 // pred_check_branch
          %211 = sbr.rel (%p209) target = $region16
        $region15: #{tpu_custom_call.1} parent=11 // pred_region
          %s213 = ssub.s32 4096, 4096
          %214 = vsyncadd [#allocation5], %s213
          %s215 = sshll.u32 [#allocation4], 4
          %s216 = int_to_ptr.vmem [resolvable:$true] %s215
          %221 = dma.hbm_to_vmem [thread:$0]  %s0, 4096, %s216, [#allocation5], 64, 64, 4
        $region16: #{tpu_custom_call.1} parent=11 // pred_fallthru
          _
        // Predicated region
        $region17: #{tpu_custom_call.1} parent=11 // pred_check
          %p222 = pneg %p58
        $region18: #{tpu_custom_call.1} parent=11 // pred_check_branch
          %224 = sbr.rel (%p222) target = $region20
        $region19: #{tpu_custom_call.1} parent=11 // pred_region
          %s226 = ssub.s32 1024, 1024
          %227 = vsyncadd [#allocation8], %s226
          %s228 = sshll.u32 [#allocation7], 4
          %s229 = int_to_ptr.vmem [resolvable:$true] %s228
          %234 = dma.hbm_to_vmem [thread:$0]  %s1, 1024, %s229, [#allocation8], 64, 64, 4
        $region20: #{tpu_custom_call.1} parent=11 // pred_fallthru
          _
        // Predicated region
        $region21: #{tpu_custom_call.1} parent=11 // pred_check
          %p235 = pneg %p105
        $region22: #{tpu_custom_call.1} parent=11 // pred_check_branch
          %237 = sbr.rel (%p235) target = $region24
        $region23: #{tpu_custom_call.1} parent=11 // pred_region
          _
        $region24: #{tpu_custom_call.1} parent=11 // pred_fallthru
          _
        // Predicated region
        $region25: #{tpu_custom_call.1} parent=11 // pred_check
          %p238 = pneg %p152
        $region26: #{tpu_custom_call.1} parent=11 // pred_check_branch
          %240 = sbr.rel (%p238) target = $region28
        $region27: #{tpu_custom_call.1} parent=11 // pred_region
          %s242 = ssub.s32 2048, 2048
          %243 = vsyncadd [#allocation8], %s242
          %s244 = sshll.u32 [#allocation11], 4
          %s245 = int_to_ptr.vmem [resolvable:$true] %s244
          %250 = dma.hbm_to_vmem [thread:$0]  %s5, 2048, %s245, [#allocation8], 128, 128, 8
        $region28: #{tpu_custom_call.1} parent=11 // pred_fallthru
          _
        // Predicated region
        $region29: #{tpu_custom_call.1} parent=11 // pred_check
          %p251 = pneg %p173
        $region30: #{tpu_custom_call.1} parent=11 // pred_check_branch
          %253 = sbr.rel (%p251) target = $region32
        $region31: #{tpu_custom_call.1} parent=11 // pred_region
          _
        $region32: #{tpu_custom_call.1} parent=11 // pred_fallthru
          _
      $region12: #{tpu_custom_call.1} parent=5 // pred_fallthru
        _
      %p254 = scmp.lt.s32.totalorder %s16, 2
      // Predicated region
      $region33: #{tpu_custom_call.1} parent=5 // pred_check
        %p255 = pneg %p254
      $region34: #{tpu_custom_call.1} parent=5 // pred_check_branch
        %257 = sbr.rel (%p255) target = $region36
      $region35: #{tpu_custom_call.1} parent=5 // pred_region
        // Predicated region
        $region37: #{tpu_custom_call.1} parent=35 // pred_check
          %p258 = pneg %p78
        $region38: #{tpu_custom_call.1} parent=35 // pred_check_branch
          %260 = sbr.rel (%p258) target = $region40
        $region39: #{tpu_custom_call.1} parent=35 // pred_region
          %s261 = sand.u32 %s16, 1
          %s262 = scalar_lea.sflag [#allocation5], %s261
          %s263 = sand.u32 %s68, 1
          %s264 = smul.addr %s263, 512
          %s265 = scalar_lea.vmem [#allocation9], %s264
          %s266 = smul.u32 32, %s16
          %s268 = ssub.s32 8192, 8192
          %269 = vsyncadd %s262, %s268
          %s270 = smul.addr %s266, 4
          %s271 = smul.addr %s270, 64
          %s272 = scalar_lea.hbm %s2, %s271
          %s273 = sshll.u32 %s265, 4
          %s274 = int_to_ptr.vmem [resolvable:$true] %s273
          %279 = dma.hbm_to_vmem [thread:$0]  %s272, 8192, %s274, %s262, 256, 256, 16
        $region40: #{tpu_custom_call.1} parent=35 // pred_fallthru
          _
        // Predicated region
        $region41: #{tpu_custom_call.1} parent=35 // pred_check
          %p280 = pneg %p125
        $region42: #{tpu_custom_call.1} parent=35 // pred_check_branch
          %282 = sbr.rel (%p280) target = $region44
        $region43: #{tpu_custom_call.1} parent=35 // pred_region
          %s283 = sand.u32 %s16, 1
          %s284 = scalar_lea.sflag [#allocation5], %s283
          %s285 = sand.u32 %s115, 1
          %s286 = smul.addr %s285, 8
          %s287 = scalar_lea.vmem [#allocation10], %s286
          %s288 = smul.u32 2, %s16
          %s290 = ssub.s32 128, 128
          %291 = vsyncadd %s284, %s290
          %s292 = smul.addr %s288, 64
          %s293 = scalar_lea.hbm %s4, %s292
          %s295 = sshll.u32 %s287, 4
          %s296 = int_to_ptr.vmem [resolvable:$true] %s295
          %298 = dma.hbm_to_vmem [thread:$0]  %s293, 128, %s296, %s284
        $region44: #{tpu_custom_call.1} parent=35 // pred_fallthru
          _
      $region36: #{tpu_custom_call.1} parent=5 // pred_fallthru
        _
      %p299 = scmp.le.s32.totalorder 1, %s16
      %p300 = scmp.lt.s32.totalorder %s16, 3
      %p301 = pnand %p299, %p300
      %p302 = pneg %p301
      // Predicated region
      $region45: #{tpu_custom_call.1} parent=5 // pred_check
        _
      $region46: #{tpu_custom_call.1} parent=5 // pred_check_branch
        %304 = sbr.rel (%p301) target = $region48
      $region47: #{tpu_custom_call.1} parent=5 // pred_region
        %s305 = ssub.s32 %s16, 1
        // Predicated region
        $region49: #{tpu_custom_call.1} parent=47 // pred_check
          %p306 = pneg %p37
        $region50: #{tpu_custom_call.1} parent=47 // pred_check_branch
          %308 = sbr.rel (%p306) target = $region52
        $region51: #{tpu_custom_call.1} parent=47 // pred_region
          %309 = dma.done [#allocation5], 4096
        $region52: #{tpu_custom_call.1} parent=47 // pred_fallthru
          _
        // Predicated region
        $region53: #{tpu_custom_call.1} parent=47 // pred_check
          %p310 = pneg %p58
        $region54: #{tpu_custom_call.1} parent=47 // pred_check_branch
          %312 = sbr.rel (%p310) target = $region56
        $region55: #{tpu_custom_call.1} parent=47 // pred_region
          %313 = dma.done [#allocation8], 1024
        $region56: #{tpu_custom_call.1} parent=47 // pred_fallthru
          _
        %s314 = sand.u32 %s21, 1
        %s315 = scalar_lea.sflag [#allocation5], %s314
        %s316 = sand.u32 %s71, 1
        %s317 = smul.addr %s316, 512
        %s318 = scalar_lea.vmem [#allocation9], %s317
        // Predicated region
        $region57: #{tpu_custom_call.1} parent=47 // pred_check
          %p319 = pneg %p84
        $region58: #{tpu_custom_call.1} parent=47 // pred_check_branch
          %321 = sbr.rel (%p319) target = $region60
        $region59: #{tpu_custom_call.1} parent=47 // pred_region
          %322 = dma.done %s315, 8192
        $region60: #{tpu_custom_call.1} parent=47 // pred_fallthru
          _
        %s323 = sand.u32 %s21, 1
        %s324 = scalar_lea.sflag [#allocation5], %s323
        %s325 = sand.u32 %s118, 1
        %s326 = smul.addr %s325, 8
        %s327 = scalar_lea.vmem [#allocation10], %s326
        // Predicated region
        $region61: #{tpu_custom_call.1} parent=47 // pred_check
          %p328 = pneg %p131
        $region62: #{tpu_custom_call.1} parent=47 // pred_check_branch
          %330 = sbr.rel (%p328) target = $region64
        $region63: #{tpu_custom_call.1} parent=47 // pred_region
          %331 = dma.done %s324, 128
        $region64: #{tpu_custom_call.1} parent=47 // pred_fallthru
          _
        // Predicated region
        $region65: #{tpu_custom_call.1} parent=47 // pred_check
          %p332 = pneg %p152
        $region66: #{tpu_custom_call.1} parent=47 // pred_check_branch
          %334 = sbr.rel (%p332) target = $region68
        $region67: #{tpu_custom_call.1} parent=47 // pred_region
          %335 = dma.done [#allocation8], 2048
        $region68: #{tpu_custom_call.1} parent=47 // pred_fallthru
          _
        %p336 = pneg %p37
        %p337 = pneg %p34
        %p338 = pneg %p58
        %p339 = pneg %p55
        %s340 = sand.u32 %s21, 1
        %s341 = scalar_lea.sflag [#allocation5], %s340
        %s342 = sand.u32 %s71, 1
        %s343 = smul.addr %s342, 512
        %s344 = scalar_lea.vmem [#allocation9], %s343
        %p345 = pneg %p84
        %p346 = pneg %p81
        %p347 = pneg %p105
        %p348 = pneg %p102
        %s349 = sand.u32 %s21, 1
        %s350 = scalar_lea.sflag [#allocation5], %s349
        %s351 = sand.u32 %s118, 1
        %s352 = smul.addr %s351, 8
        %s353 = scalar_lea.vmem [#allocation10], %s352
        %p354 = pneg %p131
        %p355 = pneg %p128
        %p356 = pneg %p152
        %p357 = pneg %p149
        %p358 = pneg %p173
        %p359 = pneg %p170
        %p360 = pneg %p194
        %p361 = pneg %p191
        %s362 = smul.u32 32, %s21
        %s363 = smul.u32 2, %s21
        %p365 = scmp.eq.s32.totalorder %s21, 0
        // Predicated region
        $region69: #{tpu_custom_call.1} parent=47 // pred_check
          %p366 = pneg %p365
        $region70: #{tpu_custom_call.1} parent=47 // pred_check_branch
          %368 = sbr.rel (%p366) target = $region72
        $region71: #{tpu_custom_call.1} parent=47 // pred_region
          %v369 = vld [vmem:[#allocation4] sm:$0xf]
          %v370 = vld [vmem:[#allocation4 + $0x4] sm:$0xf]
          %v371 = vld [vmem:[#allocation4 + $0x8] sm:$0xf]
          %v372 = vld [vmem:[#allocation4 + $0xc] sm:$0xf]
          %v373 = vld [vmem:[#allocation4 + $0x10] sm:$0xf]
          %v374 = vld [vmem:[#allocation4 + $0x14] sm:$0xf]
          %v375 = vld [vmem:[#allocation4 + $0x18] sm:$0xf]
          %v376 = vld [vmem:[#allocation4 + $0x1c] sm:$0xf]
          %v377 = vld [vmem:[#allocation4 + $0x20] sm:$0xf]
          %v378 = vld [vmem:[#allocation4 + $0x24] sm:$0xf]
          %v379 = vld [vmem:[#allocation4 + $0x28] sm:$0xf]
          %v380 = vld [vmem:[#allocation4 + $0x2c] sm:$0xf]
          %v381 = vld [vmem:[#allocation4 + $0x30] sm:$0xf]
          %v382 = vld [vmem:[#allocation4 + $0x34] sm:$0xf]
          %v383 = vld [vmem:[#allocation4 + $0x38] sm:$0xf]
          %v384 = vld [vmem:[#allocation4 + $0x3c] sm:$0xf]
          %v385 = vld [vmem:[#allocation4 + $0x40] sm:$0xf]
          %v386 = vld [vmem:[#allocation4 + $0x44] sm:$0xf]
          %v387 = vld [vmem:[#allocation4 + $0x48] sm:$0xf]
          %v388 = vld [vmem:[#allocation4 + $0x4c] sm:$0xf]
          %v389 = vld [vmem:[#allocation4 + $0x50] sm:$0xf]
          %v390 = vld [vmem:[#allocation4 + $0x54] sm:$0xf]
          %v391 = vld [vmem:[#allocation4 + $0x58] sm:$0xf]
          %v392 = vld [vmem:[#allocation4 + $0x5c] sm:$0xf]
          %v393 = vld [vmem:[#allocation4 + $0x60] sm:$0xf]
          %v394 = vld [vmem:[#allocation4 + $0x64] sm:$0xf]
          %v395 = vld [vmem:[#allocation4 + $0x68] sm:$0xf]
          %v396 = vld [vmem:[#allocation4 + $0x6c] sm:$0xf]
          %v397 = vld [vmem:[#allocation4 + $0x70] sm:$0xf]
          %v398 = vld [vmem:[#allocation4 + $0x74] sm:$0xf]
          %v399 = vld [vmem:[#allocation4 + $0x78] sm:$0xf]
          %v400 = vld [vmem:[#allocation4 + $0x7c] sm:$0xf]
          %v401 = vld [vmem:[#allocation4 + $0x80] sm:$0xf]
          %v402 = vld [vmem:[#allocation4 + $0x84] sm:$0xf]
          %v403 = vld [vmem:[#allocation4 + $0x88] sm:$0xf]
          %v404 = vld [vmem:[#allocation4 + $0x8c] sm:$0xf]
          %v405 = vld [vmem:[#allocation4 + $0x90] sm:$0xf]
          %v406 = vld [vmem:[#allocation4 + $0x94] sm:$0xf]
          %v407 = vld [vmem:[#allocation4 + $0x98] sm:$0xf]
          %v408 = vld [vmem:[#allocation4 + $0x9c] sm:$0xf]
          %v409 = vld [vmem:[#allocation4 + $0xa0] sm:$0xf]
          %v410 = vld [vmem:[#allocation4 + $0xa4] sm:$0xf]
          %v411 = vld [vmem:[#allocation4 + $0xa8] sm:$0xf]
          %v412 = vld [vmem:[#allocation4 + $0xac] sm:$0xf]
          %v413 = vld [vmem:[#allocation4 + $0xb0] sm:$0xf]
          %v414 = vld [vmem:[#allocation4 + $0xb4] sm:$0xf]
          %v415 = vld [vmem:[#allocation4 + $0xb8] sm:$0xf]
          %v416 = vld [vmem:[#allocation4 + $0xbc] sm:$0xf]
          %v417 = vld [vmem:[#allocation4 + $0xc0] sm:$0xf]
          %v418 = vld [vmem:[#allocation4 + $0xc4] sm:$0xf]
          %v419 = vld [vmem:[#allocation4 + $0xc8] sm:$0xf]
          %v420 = vld [vmem:[#allocation4 + $0xcc] sm:$0xf]
          %v421 = vld [vmem:[#allocation4 + $0xd0] sm:$0xf]
          %v422 = vld [vmem:[#allocation4 + $0xd4] sm:$0xf]
          %v423 = vld [vmem:[#allocation4 + $0xd8] sm:$0xf]
          %v424 = vld [vmem:[#allocation4 + $0xdc] sm:$0xf]
          %v425 = vld [vmem:[#allocation4 + $0xe0] sm:$0xf]
          %v426 = vld [vmem:[#allocation4 + $0xe4] sm:$0xf]
          %v427 = vld [vmem:[#allocation4 + $0xe8] sm:$0xf]
          %v428 = vld [vmem:[#allocation4 + $0xec] sm:$0xf]
          %v429 = vld [vmem:[#allocation4 + $0xf0] sm:$0xf]
          %v430 = vld [vmem:[#allocation4 + $0xf4] sm:$0xf]
          %v431 = vld [vmem:[#allocation4 + $0xf8] sm:$0xf]
          %v432 = vld [vmem:[#allocation4 + $0xfc] sm:$0xf]
          %v433 = vld [vmem:[#allocation7] sm:$0xf]
          %v434 = vld [vmem:[#allocation7 + $0x4] sm:$0xf]
          %v435 = vld [vmem:[#allocation7 + $0x8] sm:$0xf]
          %v436 = vld [vmem:[#allocation7 + $0xc] sm:$0xf]
          %v437 = vld [vmem:[#allocation7 + $0x10] sm:$0xf]
          %v438 = vld [vmem:[#allocation7 + $0x14] sm:$0xf]
          %v439 = vld [vmem:[#allocation7 + $0x18] sm:$0xf]
          %v440 = vld [vmem:[#allocation7 + $0x1c] sm:$0xf]
          %v441 = vld [vmem:[#allocation7 + $0x20] sm:$0xf]
          %v442 = vld [vmem:[#allocation7 + $0x24] sm:$0xf]
          %v443 = vld [vmem:[#allocation7 + $0x28] sm:$0xf]
          %v444 = vld [vmem:[#allocation7 + $0x2c] sm:$0xf]
          %v445 = vld [vmem:[#allocation7 + $0x30] sm:$0xf]
          %v446 = vld [vmem:[#allocation7 + $0x34] sm:$0xf]
          %v447 = vld [vmem:[#allocation7 + $0x38] sm:$0xf]
          %v448 = vld [vmem:[#allocation7 + $0x3c] sm:$0xf]
          %v513 = vunpack.c.l.b16 %v369
          %v514 = vunpack.c.l.b16 %v370
          %v515 = vunpack.c.l.b16 %v371
          %v516 = vunpack.c.l.b16 %v372
          %v517 = vunpack.c.l.b16 %v373
          %v518 = vunpack.c.l.b16 %v374
          %v519 = vunpack.c.l.b16 %v375
          %v520 = vunpack.c.l.b16 %v376
          %v521 = vunpack.c.l.b16 %v377
          %v522 = vunpack.c.l.b16 %v378
          %v523 = vunpack.c.l.b16 %v379
          %v524 = vunpack.c.l.b16 %v380
          %v525 = vunpack.c.l.b16 %v381
          %v526 = vunpack.c.l.b16 %v382
          %v527 = vunpack.c.l.b16 %v383
          %v528 = vunpack.c.l.b16 %v384
          %v529 = vunpack.c.l.b16 %v385
          %v530 = vunpack.c.l.b16 %v386
          %v531 = vunpack.c.l.b16 %v387
          %v532 = vunpack.c.l.b16 %v388
          %v533 = vunpack.c.l.b16 %v389
          %v534 = vunpack.c.l.b16 %v390
          %v535 = vunpack.c.l.b16 %v391
          %v536 = vunpack.c.l.b16 %v392
          %v537 = vunpack.c.l.b16 %v393
          %v538 = vunpack.c.l.b16 %v394
          %v539 = vunpack.c.l.b16 %v395
          %v540 = vunpack.c.l.b16 %v396
          %v541 = vunpack.c.l.b16 %v397
          %v542 = vunpack.c.l.b16 %v398
          %v543 = vunpack.c.l.b16 %v399
          %v544 = vunpack.c.l.b16 %v400
          %v545 = vunpack.c.l.b16 %v401
          %v546 = vunpack.c.l.b16 %v402
          %v547 = vunpack.c.l.b16 %v403
          %v548 = vunpack.c.l.b16 %v404
          %v549 = vunpack.c.l.b16 %v405
          %v550 = vunpack.c.l.b16 %v406
          %v551 = vunpack.c.l.b16 %v407
          %v552 = vunpack.c.l.b16 %v408
          %v553 = vunpack.c.l.b16 %v409
          %v554 = vunpack.c.l.b16 %v410
          %v555 = vunpack.c.l.b16 %v411
          %v556 = vunpack.c.l.b16 %v412
          %v557 = vunpack.c.l.b16 %v413
          %v558 = vunpack.c.l.b16 %v414
          %v559 = vunpack.c.l.b16 %v415
          %v560 = vunpack.c.l.b16 %v416
          %v561 = vunpack.c.l.b16 %v417
          %v562 = vunpack.c.l.b16 %v418
          %v563 = vunpack.c.l.b16 %v419
          %v564 = vunpack.c.l.b16 %v420
          %v565 = vunpack.c.l.b16 %v421
          %v566 = vunpack.c.l.b16 %v422
          %v567 = vunpack.c.l.b16 %v423
          %v568 = vunpack.c.l.b16 %v424
          %v569 = vunpack.c.l.b16 %v425
          %v570 = vunpack.c.l.b16 %v426
          %v571 = vunpack.c.l.b16 %v427
          %v572 = vunpack.c.l.b16 %v428
          %v573 = vunpack.c.l.b16 %v429
          %v574 = vunpack.c.l.b16 %v430
          %v575 = vunpack.c.l.b16 %v431
          %v576 = vunpack.c.l.b16 %v432
          %v577 = vpack.c.b16 %v514, %v513
          %v578 = vpack.c.b16 %v516, %v515
          %v579 = vpack.c.b16 %v518, %v517
          %v580 = vpack.c.b16 %v520, %v519
          %v581 = vpack.c.b16 %v522, %v521
          %v582 = vpack.c.b16 %v524, %v523
          %v583 = vpack.c.b16 %v526, %v525
          %v584 = vpack.c.b16 %v528, %v527
          %v585 = vpack.c.b16 %v530, %v529
          %v586 = vpack.c.b16 %v532, %v531
          %v587 = vpack.c.b16 %v534, %v533
          %v588 = vpack.c.b16 %v536, %v535
          %v589 = vpack.c.b16 %v538, %v537
          %v590 = vpack.c.b16 %v540, %v539
          %v591 = vpack.c.b16 %v542, %v541
          %v592 = vpack.c.b16 %v544, %v543
          %v593 = vpack.c.b16 %v546, %v545
          %v594 = vpack.c.b16 %v548, %v547
          %v595 = vpack.c.b16 %v550, %v549
          %v596 = vpack.c.b16 %v552, %v551
          %v597 = vpack.c.b16 %v554, %v553
          %v598 = vpack.c.b16 %v556, %v555
          %v599 = vpack.c.b16 %v558, %v557
          %v600 = vpack.c.b16 %v560, %v559
          %v601 = vpack.c.b16 %v562, %v561
          %v602 = vpack.c.b16 %v564, %v563
          %v603 = vpack.c.b16 %v566, %v565
          %v604 = vpack.c.b16 %v568, %v567
          %v605 = vpack.c.b16 %v570, %v569
          %v606 = vpack.c.b16 %v572, %v571
          %v607 = vpack.c.b16 %v574, %v573
          %v608 = vpack.c.b16 %v576, %v575
          %v657 = vunpack.c.l.b16 %v433
          %v658 = vunpack.c.l.b16 %v434
          %v659 = vunpack.c.l.b16 %v435
          %v660 = vunpack.c.l.b16 %v436
          %v661 = vunpack.c.l.b16 %v437
          %v662 = vunpack.c.l.b16 %v438
          %v663 = vunpack.c.l.b16 %v439
          %v664 = vunpack.c.l.b16 %v440
          %v665 = vunpack.c.l.b16 %v441
          %v666 = vunpack.c.l.b16 %v442
          %v667 = vunpack.c.l.b16 %v443
          %v668 = vunpack.c.l.b16 %v444
          %v669 = vunpack.c.l.b16 %v445
          %v670 = vunpack.c.l.b16 %v446
          %v671 = vunpack.c.l.b16 %v447
          %v672 = vunpack.c.l.b16 %v448
          %v673 = vpack.c.b16 %v658, %v657
          %v674 = vpack.c.b16 %v660, %v659
          %v675 = vpack.c.b16 %v662, %v661
          %v676 = vpack.c.b16 %v664, %v663
          %v677 = vpack.c.b16 %v666, %v665
          %v678 = vpack.c.b16 %v668, %v667
          %v679 = vpack.c.b16 %v670, %v669
          %v680 = vpack.c.b16 %v672, %v671
          %689 = vmatprep.subr.bf16.mxu0 0
          %690 = vmatpush1.bf16.msra.mxu0 %v680
          %691 = vmatprep.subr.bf16.mxu0 0
          %692 = vmatpush1.bf16.msra.mxu0 %v679
          %693 = vmatprep.subr.bf16.mxu0 0
          %694 = vmatpush1.bf16.msra.mxu0 %v678
          %695 = vmatprep.subr.bf16.mxu0 0
          %696 = vmatpush1.bf16.msra.mxu0 %v677
          %697 = vmatprep.subr.bf16.mxu0 0
          %698 = vmatpush1.bf16.msra.mxu0 %v676
          %699 = vmatprep.subr.bf16.mxu0 0
          %700 = vmatpush1.bf16.msra.mxu0 %v675
          %701 = vmatprep.subr.bf16.mxu0 0
          %702 = vmatpush1.bf16.msra.mxu0 %v674
          %703 = vmatprep.subr.bf16.mxu0 0
          %704 = vmatpush1.bf16.msra.mxu0 %v673
          %705 = vmatprep.subr.bf16.mxu0 0
          %706 = vmatpush2.bf16.msra.mxu0 0
          %707 = vmatprep.subr.bf16.mxu0 0
          %708 = vmatpush2.bf16.msra.mxu0 0
          %709 = vmatprep.subr.bf16.mxu0 0
          %710 = vmatpush2.bf16.msra.mxu0 0
          %711 = vmatprep.subr.bf16.mxu0 0
          %712 = vmatpush2.bf16.msra.mxu0 0
          %713 = vmatprep.subr.bf16.mxu0 0
          %714 = vmatpush2.bf16.msra.mxu0 0
          %715 = vmatprep.subr.bf16.mxu0 0
          %716 = vmatpush2.bf16.msra.mxu0 0
          %717 = vmatprep.subr.bf16.mxu0 0
          %718 = vmatpush2.bf16.msra.mxu0 0
          %719 = vmatprep.subr.bf16.mxu0 0
          %720 = vmatpush2.bf16.msra.mxu0 0
          %721 = vmatprep.mubr.bf16.mxu0 0
          %722 = vmatmul.mubr.bf16.gmra.mxu0 %v577
          %v723 = vpop.f32.mrf.mxu0
          %v724 = vadd.f32 0.0, %v723
          %v725 = vpop.f32.mrf.mxu0
          %v726 = vpop.f32.mrf.mxu0
          %v727 = vadd.f32 0.0, %v726
          %v728 = vpop.f32.mrf.mxu0
          %729 = vmatprep.mubr.bf16.mxu0 0
          %730 = vmatmul.mubr.bf16.gmra.mxu0 %v578
          %v731 = vpop.f32.mrf.mxu0
          %v732 = vadd.f32 0.0, %v731
          %v733 = vpop.f32.mrf.mxu0
          %v734 = vpop.f32.mrf.mxu0
          %v735 = vadd.f32 0.0, %v734
          %v736 = vpop.f32.mrf.mxu0
          %737 = vmatprep.mubr.bf16.mxu0 0
          %738 = vmatmul.mubr.bf16.gmra.mxu0 %v579
          %v739 = vpop.f32.mrf.mxu0
          %v740 = vadd.f32 0.0, %v739
          %v741 = vpop.f32.mrf.mxu0
          %v742 = vpop.f32.mrf.mxu0
          %v743 = vadd.f32 0.0, %v742
          %v744 = vpop.f32.mrf.mxu0
          %745 = vmatprep.mubr.bf16.mxu0 0
          %746 = vmatmul.mubr.bf16.gmra.mxu0 %v580
          %v747 = vpop.f32.mrf.mxu0
          %v748 = vadd.f32 0.0, %v747
          %v749 = vpop.f32.mrf.mxu0
          %v750 = vpop.f32.mrf.mxu0
          %v751 = vadd.f32 0.0, %v750
          %v752 = vpop.f32.mrf.mxu0
          %753 = vmatprep.mubr.bf16.mxu0 0
          %754 = vmatmul.mubr.bf16.gmra.mxu0 %v581
          %v755 = vpop.f32.mrf.mxu0
          %v756 = vadd.f32 0.0, %v755
          %v757 = vpop.f32.mrf.mxu0
          %v758 = vpop.f32.mrf.mxu0
          %v759 = vadd.f32 0.0, %v758
          %v760 = vpop.f32.mrf.mxu0
          %761 = vmatprep.mubr.bf16.mxu0 0
          %762 = vmatmul.mubr.bf16.gmra.mxu0 %v582
          %v763 = vpop.f32.mrf.mxu0
          %v764 = vadd.f32 0.0, %v763
          %v765 = vpop.f32.mrf.mxu0
          %v766 = vpop.f32.mrf.mxu0
          %v767 = vadd.f32 0.0, %v766
          %v768 = vpop.f32.mrf.mxu0
          %769 = vmatprep.mubr.bf16.mxu0 0
          %770 = vmatmul.mubr.bf16.gmra.mxu0 %v583
          %v771 = vpop.f32.mrf.mxu0
          %v772 = vadd.f32 0.0, %v771
          %v773 = vpop.f32.mrf.mxu0
          %v774 = vpop.f32.mrf.mxu0
          %v775 = vadd.f32 0.0, %v774
          %v776 = vpop.f32.mrf.mxu0
          %777 = vmatprep.mubr.bf16.mxu0 0
          %778 = vmatmul.mubr.bf16.gmra.mxu0 %v584
          %v779 = vpop.f32.mrf.mxu0
          %v780 = vadd.f32 0.0, %v779
          %v781 = vpop.f32.mrf.mxu0
          %v782 = vpop.f32.mrf.mxu0
          %v783 = vadd.f32 0.0, %v782
          %v784 = vpop.f32.mrf.mxu0
          %785 = vmatprep.mubr.bf16.mxu0 0
          %786 = vmatmul.mubr.bf16.gmra.mxu0 %v585
          %v787 = vpop.f32.mrf.mxu0
          %v788 = vadd.f32 0.0, %v787
          %v789 = vpop.f32.mrf.mxu0
          %v790 = vpop.f32.mrf.mxu0
          %v791 = vadd.f32 0.0, %v790
          %v792 = vpop.f32.mrf.mxu0
          %793 = vmatprep.mubr.bf16.mxu0 0
          %794 = vmatmul.mubr.bf16.gmra.mxu0 %v586
          %v795 = vpop.f32.mrf.mxu0
          %v796 = vadd.f32 0.0, %v795
          %v797 = vpop.f32.mrf.mxu0
          %v798 = vpop.f32.mrf.mxu0
          %v799 = vadd.f32 0.0, %v798
          %v800 = vpop.f32.mrf.mxu0
          %801 = vmatprep.mubr.bf16.mxu0 0
          %802 = vmatmul.mubr.bf16.gmra.mxu0 %v587
          %v803 = vpop.f32.mrf.mxu0
          %v804 = vadd.f32 0.0, %v803
          %v805 = vpop.f32.mrf.mxu0
          %v806 = vpop.f32.mrf.mxu0
          %v807 = vadd.f32 0.0, %v806
          %v808 = vpop.f32.mrf.mxu0
          %809 = vmatprep.mubr.bf16.mxu0 0
          %810 = vmatmul.mubr.bf16.gmra.mxu0 %v588
          %v811 = vpop.f32.mrf.mxu0
          %v812 = vadd.f32 0.0, %v811
          %v813 = vpop.f32.mrf.mxu0
          %v814 = vpop.f32.mrf.mxu0
          %v815 = vadd.f32 0.0, %v814
          %v816 = vpop.f32.mrf.mxu0
          %817 = vmatprep.mubr.bf16.mxu0 0
          %818 = vmatmul.mubr.bf16.gmra.mxu0 %v589
          %v819 = vpop.f32.mrf.mxu0
          %v820 = vadd.f32 0.0, %v819
          %v821 = vpop.f32.mrf.mxu0
          %v822 = vpop.f32.mrf.mxu0
          %v823 = vadd.f32 0.0, %v822
          %v824 = vpop.f32.mrf.mxu0
          %825 = vmatprep.mubr.bf16.mxu0 0
          %826 = vmatmul.mubr.bf16.gmra.mxu0 %v590
          %v827 = vpop.f32.mrf.mxu0
          %v828 = vadd.f32 0.0, %v827
          %v829 = vpop.f32.mrf.mxu0
          %v830 = vpop.f32.mrf.mxu0
          %v831 = vadd.f32 0.0, %v830
          %v832 = vpop.f32.mrf.mxu0
          %833 = vmatprep.mubr.bf16.mxu0 0
          %834 = vmatmul.mubr.bf16.gmra.mxu0 %v591
          %v835 = vpop.f32.mrf.mxu0
          %v836 = vadd.f32 0.0, %v835
          %v837 = vpop.f32.mrf.mxu0
          %v838 = vpop.f32.mrf.mxu0
          %v839 = vadd.f32 0.0, %v838
          %v840 = vpop.f32.mrf.mxu0
          %841 = vmatprep.mubr.bf16.mxu0 0
          %842 = vmatmul.mubr.bf16.gmra.mxu0 %v592
          %v843 = vpop.f32.mrf.mxu0
          %v844 = vadd.f32 0.0, %v843
          %v845 = vpop.f32.mrf.mxu0
          %v846 = vpop.f32.mrf.mxu0
          %v847 = vadd.f32 0.0, %v846
          %v848 = vpop.f32.mrf.mxu0
          %849 = vmatprep.mubr.bf16.mxu0 0
          %850 = vmatmul.mubr.bf16.gmra.mxu0 %v593
          %v851 = vpop.f32.mrf.mxu0
          %v852 = vadd.f32 0.0, %v851
          %v853 = vpop.f32.mrf.mxu0
          %v854 = vpop.f32.mrf.mxu0
          %v855 = vadd.f32 0.0, %v854
          %v856 = vpop.f32.mrf.mxu0
          %857 = vmatprep.mubr.bf16.mxu0 0
          %858 = vmatmul.mubr.bf16.gmra.mxu0 %v594
          %v859 = vpop.f32.mrf.mxu0
          %v860 = vadd.f32 0.0, %v859
          %v861 = vpop.f32.mrf.mxu0
          %v862 = vpop.f32.mrf.mxu0
          %v863 = vadd.f32 0.0, %v862
          %v864 = vpop.f32.mrf.mxu0
          %865 = vmatprep.mubr.bf16.mxu0 0
          %866 = vmatmul.mubr.bf16.gmra.mxu0 %v595
          %v867 = vpop.f32.mrf.mxu0
          %v868 = vadd.f32 0.0, %v867
          %v869 = vpop.f32.mrf.mxu0
          %v870 = vpop.f32.mrf.mxu0
          %v871 = vadd.f32 0.0, %v870
          %v872 = vpop.f32.mrf.mxu0
          %873 = vmatprep.mubr.bf16.mxu0 0
          %874 = vmatmul.mubr.bf16.gmra.mxu0 %v596
          %v875 = vpop.f32.mrf.mxu0
          %v876 = vadd.f32 0.0, %v875
          %v877 = vpop.f32.mrf.mxu0
          %v878 = vpop.f32.mrf.mxu0
          %v879 = vadd.f32 0.0, %v878
          %v880 = vpop.f32.mrf.mxu0
          %881 = vmatprep.mubr.bf16.mxu0 0
          %882 = vmatmul.mubr.bf16.gmra.mxu0 %v597
          %v883 = vpop.f32.mrf.mxu0
          %v884 = vadd.f32 0.0, %v883
          %v885 = vpop.f32.mrf.mxu0
          %v886 = vpop.f32.mrf.mxu0
          %v887 = vadd.f32 0.0, %v886
          %v888 = vpop.f32.mrf.mxu0
          %889 = vmatprep.mubr.bf16.mxu0 0
          %890 = vmatmul.mubr.bf16.gmra.mxu0 %v598
          %v891 = vpop.f32.mrf.mxu0
          %v892 = vadd.f32 0.0, %v891
          %v893 = vpop.f32.mrf.mxu0
          %v894 = vpop.f32.mrf.mxu0
          %v895 = vadd.f32 0.0, %v894
          %v896 = vpop.f32.mrf.mxu0
          %897 = vmatprep.mubr.bf16.mxu0 0
          %898 = vmatmul.mubr.bf16.gmra.mxu0 %v599
          %v899 = vpop.f32.mrf.mxu0
          %v900 = vadd.f32 0.0, %v899
          %v901 = vpop.f32.mrf.mxu0
          %v902 = vpop.f32.mrf.mxu0
          %v903 = vadd.f32 0.0, %v902
          %v904 = vpop.f32.mrf.mxu0
          %905 = vmatprep.mubr.bf16.mxu0 0
          %906 = vmatmul.mubr.bf16.gmra.mxu0 %v600
          %v907 = vpop.f32.mrf.mxu0
          %v908 = vadd.f32 0.0, %v907
          %v909 = vpop.f32.mrf.mxu0
          %v910 = vpop.f32.mrf.mxu0
          %v911 = vadd.f32 0.0, %v910
          %v912 = vpop.f32.mrf.mxu0
          %913 = vmatprep.mubr.bf16.mxu0 0
          %914 = vmatmul.mubr.bf16.gmra.mxu0 %v601
          %v915 = vpop.f32.mrf.mxu0
          %v916 = vadd.f32 0.0, %v915
          %v917 = vpop.f32.mrf.mxu0
          %v918 = vpop.f32.mrf.mxu0
          %v919 = vadd.f32 0.0, %v918
          %v920 = vpop.f32.mrf.mxu0
          %921 = vmatprep.mubr.bf16.mxu0 0
          %922 = vmatmul.mubr.bf16.gmra.mxu0 %v602
          %v923 = vpop.f32.mrf.mxu0
          %v924 = vadd.f32 0.0, %v923
          %v925 = vpop.f32.mrf.mxu0
          %v926 = vpop.f32.mrf.mxu0
          %v927 = vadd.f32 0.0, %v926
          %v928 = vpop.f32.mrf.mxu0
          %929 = vmatprep.mubr.bf16.mxu0 0
          %930 = vmatmul.mubr.bf16.gmra.mxu0 %v603
          %v931 = vpop.f32.mrf.mxu0
          %v932 = vadd.f32 0.0, %v931
          %v933 = vpop.f32.mrf.mxu0
          %v934 = vpop.f32.mrf.mxu0
          %v935 = vadd.f32 0.0, %v934
          %v936 = vpop.f32.mrf.mxu0
          %937 = vmatprep.mubr.bf16.mxu0 0
          %938 = vmatmul.mubr.bf16.gmra.mxu0 %v604
          %v939 = vpop.f32.mrf.mxu0
          %v940 = vadd.f32 0.0, %v939
          %v941 = vpop.f32.mrf.mxu0
          %v942 = vpop.f32.mrf.mxu0
          %v943 = vadd.f32 0.0, %v942
          %v944 = vpop.f32.mrf.mxu0
          %945 = vmatprep.mubr.bf16.mxu0 0
          %946 = vmatmul.mubr.bf16.gmra.mxu0 %v605
          %v947 = vpop.f32.mrf.mxu0
          %v948 = vadd.f32 0.0, %v947
          %v949 = vpop.f32.mrf.mxu0
          %v950 = vpop.f32.mrf.mxu0
          %v951 = vadd.f32 0.0, %v950
          %v952 = vpop.f32.mrf.mxu0
          %953 = vmatprep.mubr.bf16.mxu0 0
          %954 = vmatmul.mubr.bf16.gmra.mxu0 %v606
          %v955 = vpop.f32.mrf.mxu0
          %v956 = vadd.f32 0.0, %v955
          %v957 = vpop.f32.mrf.mxu0
          %v958 = vpop.f32.mrf.mxu0
          %v959 = vadd.f32 0.0, %v958
          %v960 = vpop.f32.mrf.mxu0
          %961 = vmatprep.mubr.bf16.mxu0 0
          %962 = vmatmul.mubr.bf16.gmra.mxu0 %v607
          %v963 = vpop.f32.mrf.mxu0
          %v964 = vadd.f32 0.0, %v963
          %v965 = vpop.f32.mrf.mxu0
          %v966 = vpop.f32.mrf.mxu0
          %v967 = vadd.f32 0.0, %v966
          %v968 = vpop.f32.mrf.mxu0
          %969 = vmatprep.mubr.bf16.mxu0 0
          %970 = vmatmul.mubr.bf16.gmra.mxu0 %v608
          %v971 = vpop.f32.mrf.mxu0
          %v972 = vadd.f32 0.0, %v971
          %v973 = vpop.f32.mrf.mxu0
          %v974 = vpop.f32.mrf.mxu0
          %v975 = vadd.f32 0.0, %v974
          %v976 = vpop.f32.mrf.mxu0
          %977 = vdwg.mxu0
          %v978 = vpack.c.bf16 %v727, %v724
          %v979 = vpack.c.bf16 %v735, %v732
          %v980 = vpack.c.bf16 %v743, %v740
          %v981 = vpack.c.bf16 %v751, %v748
          %v982 = vpack.c.bf16 %v759, %v756
          %v983 = vpack.c.bf16 %v767, %v764
          %v984 = vpack.c.bf16 %v775, %v772
          %v985 = vpack.c.bf16 %v783, %v780
          %v986 = vpack.c.bf16 %v791, %v788
          %v987 = vpack.c.bf16 %v799, %v796
          %v988 = vpack.c.bf16 %v807, %v804
          %v989 = vpack.c.bf16 %v815, %v812
          %v990 = vpack.c.bf16 %v823, %v820
          %v991 = vpack.c.bf16 %v831, %v828
          %v992 = vpack.c.bf16 %v839, %v836
          %v993 = vpack.c.bf16 %v847, %v844
          %v994 = vpack.c.bf16 %v855, %v852
          %v995 = vpack.c.bf16 %v863, %v860
          %v996 = vpack.c.bf16 %v871, %v868
          %v997 = vpack.c.bf16 %v879, %v876
          %v998 = vpack.c.bf16 %v887, %v884
          %v999 = vpack.c.bf16 %v895, %v892
          %v1000 = vpack.c.bf16 %v903, %v900
          %v1001 = vpack.c.bf16 %v911, %v908
          %v1002 = vpack.c.bf16 %v919, %v916
          %v1003 = vpack.c.bf16 %v927, %v924
          %v1004 = vpack.c.bf16 %v935, %v932
          %v1005 = vpack.c.bf16 %v943, %v940
          %v1006 = vpack.c.bf16 %v951, %v948
          %v1007 = vpack.c.bf16 %v959, %v956
          %v1008 = vpack.c.bf16 %v967, %v964
          %v1009 = vpack.c.bf16 %v975, %v972
          %v1042 = vunpack.c.l.b16 %v978
          %v1043 = vunpack.c.h.b16 %v978
          %v1044 = vunpack.c.l.b16 %v979
          %v1045 = vunpack.c.h.b16 %v979
          %v1046 = vunpack.c.l.b16 %v980
          %v1047 = vunpack.c.h.b16 %v980
          %v1048 = vunpack.c.l.b16 %v981
          %v1049 = vunpack.c.h.b16 %v981
          %v1050 = vunpack.c.l.b16 %v982
          %v1051 = vunpack.c.h.b16 %v982
          %v1052 = vunpack.c.l.b16 %v983
          %v1053 = vunpack.c.h.b16 %v983
          %v1054 = vunpack.c.l.b16 %v984
          %v1055 = vunpack.c.h.b16 %v984
          %v1056 = vunpack.c.l.b16 %v985
          %v1057 = vunpack.c.h.b16 %v985
          %v1058 = vunpack.c.l.b16 %v986
          %v1059 = vunpack.c.h.b16 %v986
          %v1060 = vunpack.c.l.b16 %v987
          %v1061 = vunpack.c.h.b16 %v987
          %v1062 = vunpack.c.l.b16 %v988
          %v1063 = vunpack.c.h.b16 %v988
          %v1064 = vunpack.c.l.b16 %v989
          %v1065 = vunpack.c.h.b16 %v989
          %v1066 = vunpack.c.l.b16 %v990
          %v1067 = vunpack.c.h.b16 %v990
          %v1068 = vunpack.c.l.b16 %v991
          %v1069 = vunpack.c.h.b16 %v991
          %v1070 = vunpack.c.l.b16 %v992
          %v1071 = vunpack.c.h.b16 %v992
          %v1072 = vunpack.c.l.b16 %v993
          %v1073 = vunpack.c.h.b16 %v993
          %v1074 = vunpack.c.l.b16 %v994
          %v1075 = vunpack.c.h.b16 %v994
          %v1076 = vunpack.c.l.b16 %v995
          %v1077 = vunpack.c.h.b16 %v995
          %v1078 = vunpack.c.l.b16 %v996
          %v1079 = vunpack.c.h.b16 %v996
          %v1080 = vunpack.c.l.b16 %v997
          %v1081 = vunpack.c.h.b16 %v997
          %v1082 = vunpack.c.l.b16 %v998
          %v1083 = vunpack.c.h.b16 %v998
          %v1084 = vunpack.c.l.b16 %v999
          %v1085 = vunpack.c.h.b16 %v999
          %v1086 = vunpack.c.l.b16 %v1000
          %v1087 = vunpack.c.h.b16 %v1000
          %v1088 = vunpack.c.l.b16 %v1001
          %v1089 = vunpack.c.h.b16 %v1001
          %v1090 = vunpack.c.l.b16 %v1002
          %v1091 = vunpack.c.h.b16 %v1002
          %v1092 = vunpack.c.l.b16 %v1003
          %v1093 = vunpack.c.h.b16 %v1003
          %v1094 = vunpack.c.l.b16 %v1004
          %v1095 = vunpack.c.h.b16 %v1004
          %v1096 = vunpack.c.l.b16 %v1005
          %v1097 = vunpack.c.h.b16 %v1005
          %v1098 = vunpack.c.l.b16 %v1006
          %v1099 = vunpack.c.h.b16 %v1006
          %v1100 = vunpack.c.l.b16 %v1007
          %v1101 = vunpack.c.h.b16 %v1007
          %v1102 = vunpack.c.l.b16 %v1008
          %v1103 = vunpack.c.h.b16 %v1008
          %v1104 = vunpack.c.l.b16 %v1009
          %v1105 = vunpack.c.h.b16 %v1009
          %v1106 = vpack.c.b16 %v1042, %v1042
          %v1107 = vpack.c.b16 %v1043, %v1043
          %v1108 = vpack.c.b16 %v1044, %v1044
          %v1109 = vpack.c.b16 %v1045, %v1045
          %v1110 = vpack.c.b16 %v1046, %v1046
          %v1111 = vpack.c.b16 %v1047, %v1047
          %v1112 = vpack.c.b16 %v1048, %v1048
          %v1113 = vpack.c.b16 %v1049, %v1049
          %v1114 = vpack.c.b16 %v1050, %v1050
          %v1115 = vpack.c.b16 %v1051, %v1051
          %v1116 = vpack.c.b16 %v1052, %v1052
          %v1117 = vpack.c.b16 %v1053, %v1053
          %v1118 = vpack.c.b16 %v1054, %v1054
          %v1119 = vpack.c.b16 %v1055, %v1055
          %v1120 = vpack.c.b16 %v1056, %v1056
          %v1121 = vpack.c.b16 %v1057, %v1057
          %v1122 = vpack.c.b16 %v1058, %v1058
          %v1123 = vpack.c.b16 %v1059, %v1059
          %v1124 = vpack.c.b16 %v1060, %v1060
          %v1125 = vpack.c.b16 %v1061, %v1061
          %v1126 = vpack.c.b16 %v1062, %v1062
          %v1127 = vpack.c.b16 %v1063, %v1063
          %v1128 = vpack.c.b16 %v1064, %v1064
          %v1129 = vpack.c.b16 %v1065, %v1065
          %v1130 = vpack.c.b16 %v1066, %v1066
          %v1131 = vpack.c.b16 %v1067, %v1067
          %v1132 = vpack.c.b16 %v1068, %v1068
          %v1133 = vpack.c.b16 %v1069, %v1069
          %v1134 = vpack.c.b16 %v1070, %v1070
          %v1135 = vpack.c.b16 %v1071, %v1071
          %v1136 = vpack.c.b16 %v1072, %v1072
          %v1137 = vpack.c.b16 %v1073, %v1073
          %v1138 = vpack.c.b16 %v1074, %v1074
          %v1139 = vpack.c.b16 %v1075, %v1075
          %v1140 = vpack.c.b16 %v1076, %v1076
          %v1141 = vpack.c.b16 %v1077, %v1077
          %v1142 = vpack.c.b16 %v1078, %v1078
          %v1143 = vpack.c.b16 %v1079, %v1079
          %v1144 = vpack.c.b16 %v1080, %v1080
          %v1145 = vpack.c.b16 %v1081, %v1081
          %v1146 = vpack.c.b16 %v1082, %v1082
          %v1147 = vpack.c.b16 %v1083, %v1083
          %v1148 = vpack.c.b16 %v1084, %v1084
          %v1149 = vpack.c.b16 %v1085, %v1085
          %v1150 = vpack.c.b16 %v1086, %v1086
          %v1151 = vpack.c.b16 %v1087, %v1087
          %v1152 = vpack.c.b16 %v1088, %v1088
          %v1153 = vpack.c.b16 %v1089, %v1089
          %v1154 = vpack.c.b16 %v1090, %v1090
          %v1155 = vpack.c.b16 %v1091, %v1091
          %v1156 = vpack.c.b16 %v1092, %v1092
          %v1157 = vpack.c.b16 %v1093, %v1093
          %v1158 = vpack.c.b16 %v1094, %v1094
          %v1159 = vpack.c.b16 %v1095, %v1095
          %v1160 = vpack.c.b16 %v1096, %v1096
          %v1161 = vpack.c.b16 %v1097, %v1097
          %v1162 = vpack.c.b16 %v1098, %v1098
          %v1163 = vpack.c.b16 %v1099, %v1099
          %v1164 = vpack.c.b16 %v1100, %v1100
          %v1165 = vpack.c.b16 %v1101, %v1101
          %v1166 = vpack.c.b16 %v1102, %v1102
          %v1167 = vpack.c.b16 %v1103, %v1103
          %v1168 = vpack.c.b16 %v1104, %v1104
          %v1169 = vpack.c.b16 %v1105, %v1105
          %1234 = vst [vmem:[#allocation2] sm:$0xf] %v1106
          %1235 = vst [vmem:[#allocation2 + $0x4] sm:$0xf] %v1107
          %1236 = vst [vmem:[#allocation2 + $0x8] sm:$0xf] %v1108
          %1237 = vst [vmem:[#allocation2 + $0xc] sm:$0xf] %v1109
          %1238 = vst [vmem:[#allocation2 + $0x10] sm:$0xf] %v1110
          %1239 = vst [vmem:[#allocation2 + $0x14] sm:$0xf] %v1111
          %1240 = vst [vmem:[#allocation2 + $0x18] sm:$0xf] %v1112
          %1241 = vst [vmem:[#allocation2 + $0x1c] sm:$0xf] %v1113
          %1242 = vst [vmem:[#allocation2 + $0x20] sm:$0xf] %v1114
          %1243 = vst [vmem:[#allocation2 + $0x24] sm:$0xf] %v1115
          %1244 = vst [vmem:[#allocation2 + $0x28] sm:$0xf] %v1116
          %1245 = vst [vmem:[#allocation2 + $0x2c] sm:$0xf] %v1117
          %1246 = vst [vmem:[#allocation2 + $0x30] sm:$0xf] %v1118
          %1247 = vst [vmem:[#allocation2 + $0x34] sm:$0xf] %v1119
          %1248 = vst [vmem:[#allocation2 + $0x38] sm:$0xf] %v1120
          %1249 = vst [vmem:[#allocation2 + $0x3c] sm:$0xf] %v1121
          %1250 = vst [vmem:[#allocation2 + $0x40] sm:$0xf] %v1122
          %1251 = vst [vmem:[#allocation2 + $0x44] sm:$0xf] %v1123
          %1252 = vst [vmem:[#allocation2 + $0x48] sm:$0xf] %v1124
          %1253 = vst [vmem:[#allocation2 + $0x4c] sm:$0xf] %v1125
          %1254 = vst [vmem:[#allocation2 + $0x50] sm:$0xf] %v1126
          %1255 = vst [vmem:[#allocation2 + $0x54] sm:$0xf] %v1127
          %1256 = vst [vmem:[#allocation2 + $0x58] sm:$0xf] %v1128
          %1257 = vst [vmem:[#allocation2 + $0x5c] sm:$0xf] %v1129
          %1258 = vst [vmem:[#allocation2 + $0x60] sm:$0xf] %v1130
          %1259 = vst [vmem:[#allocation2 + $0x64] sm:$0xf] %v1131
          %1260 = vst [vmem:[#allocation2 + $0x68] sm:$0xf] %v1132
          %1261 = vst [vmem:[#allocation2 + $0x6c] sm:$0xf] %v1133
          %1262 = vst [vmem:[#allocation2 + $0x70] sm:$0xf] %v1134
          %1263 = vst [vmem:[#allocation2 + $0x74] sm:$0xf] %v1135
          %1264 = vst [vmem:[#allocation2 + $0x78] sm:$0xf] %v1136
          %1265 = vst [vmem:[#allocation2 + $0x7c] sm:$0xf] %v1137
          %1266 = vst [vmem:[#allocation2 + $0x80] sm:$0xf] %v1138
          %1267 = vst [vmem:[#allocation2 + $0x84] sm:$0xf] %v1139
          %1268 = vst [vmem:[#allocation2 + $0x88] sm:$0xf] %v1140
          %1269 = vst [vmem:[#allocation2 + $0x8c] sm:$0xf] %v1141
          %1270 = vst [vmem:[#allocation2 + $0x90] sm:$0xf] %v1142
          %1271 = vst [vmem:[#allocation2 + $0x94] sm:$0xf] %v1143
          %1272 = vst [vmem:[#allocation2 + $0x98] sm:$0xf] %v1144
          %1273 = vst [vmem:[#allocation2 + $0x9c] sm:$0xf] %v1145
          %1274 = vst [vmem:[#allocation2 + $0xa0] sm:$0xf] %v1146
          %1275 = vst [vmem:[#allocation2 + $0xa4] sm:$0xf] %v1147
          %1276 = vst [vmem:[#allocation2 + $0xa8] sm:$0xf] %v1148
          %1277 = vst [vmem:[#allocation2 + $0xac] sm:$0xf] %v1149
          %1278 = vst [vmem:[#allocation2 + $0xb0] sm:$0xf] %v1150
          %1279 = vst [vmem:[#allocation2 + $0xb4] sm:$0xf] %v1151
          %1280 = vst [vmem:[#allocation2 + $0xb8] sm:$0xf] %v1152
          %1281 = vst [vmem:[#allocation2 + $0xbc] sm:$0xf] %v1153
          %1282 = vst [vmem:[#allocation2 + $0xc0] sm:$0xf] %v1154
          %1283 = vst [vmem:[#allocation2 + $0xc4] sm:$0xf] %v1155
          %1284 = vst [vmem:[#allocation2 + $0xc8] sm:$0xf] %v1156
          %1285 = vst [vmem:[#allocation2 + $0xcc] sm:$0xf] %v1157
          %1286 = vst [vmem:[#allocation2 + $0xd0] sm:$0xf] %v1158
          %1287 = vst [vmem:[#allocation2 + $0xd4] sm:$0xf] %v1159
          %1288 = vst [vmem:[#allocation2 + $0xd8] sm:$0xf] %v1160
          %1289 = vst [vmem:[#allocation2 + $0xdc] sm:$0xf] %v1161
          %1290 = vst [vmem:[#allocation2 + $0xe0] sm:$0xf] %v1162
          %1291 = vst [vmem:[#allocation2 + $0xe4] sm:$0xf] %v1163
          %1292 = vst [vmem:[#allocation2 + $0xe8] sm:$0xf] %v1164
          %1293 = vst [vmem:[#allocation2 + $0xec] sm:$0xf] %v1165
          %1294 = vst [vmem:[#allocation2 + $0xf0] sm:$0xf] %v1166
          %1295 = vst [vmem:[#allocation2 + $0xf4] sm:$0xf] %v1167
          %1296 = vst [vmem:[#allocation2 + $0xf8] sm:$0xf] %v1168
          %1297 = vst [vmem:[#allocation2 + $0xfc] sm:$0xf] %v1169
          %1298 = vst [vmem:[#allocation3] sm:$0xff] 0.0
        $region72: #{tpu_custom_call.1} parent=47 // pred_fallthru
          _
        %v1299 = vld [vmem:[%s318] sm:$0xff]
        %v1300 = vld [vmem:[%s318 + $0x8] sm:$0xff]
        %v1301 = vld [vmem:[%s318 + $0x10] sm:$0xff]
        %v1302 = vld [vmem:[%s318 + $0x18] sm:$0xff]
        %v1303 = vld [vmem:[%s318 + $0x20] sm:$0xff]
        %v1304 = vld [vmem:[%s318 + $0x28] sm:$0xff]
        %v1305 = vld [vmem:[%s318 + $0x30] sm:$0xff]
        %v1306 = vld [vmem:[%s318 + $0x38] sm:$0xff]
        %v1307 = vld [vmem:[%s318 + $0x40] sm:$0xff]
        %v1308 = vld [vmem:[%s318 + $0x48] sm:$0xff]
        %v1309 = vld [vmem:[%s318 + $0x50] sm:$0xff]
        %v1310 = vld [vmem:[%s318 + $0x58] sm:$0xff]
        %v1311 = vld [vmem:[%s318 + $0x60] sm:$0xff]
        %v1312 = vld [vmem:[%s318 + $0x68] sm:$0xff]
        %v1313 = vld [vmem:[%s318 + $0x70] sm:$0xff]
        %v1314 = vld [vmem:[%s318 + $0x78] sm:$0xff]
        %v1315 = vld [vmem:[%s318 + $0x80] sm:$0xff]
        %v1316 = vld [vmem:[%s318 + $0x88] sm:$0xff]
        %v1317 = vld [vmem:[%s318 + $0x90] sm:$0xff]
        %v1318 = vld [vmem:[%s318 + $0x98] sm:$0xff]
        %v1319 = vld [vmem:[%s318 + $0xa0] sm:$0xff]
        %v1320 = vld [vmem:[%s318 + $0xa8] sm:$0xff]
        %v1321 = vld [vmem:[%s318 + $0xb0] sm:$0xff]
        %v1322 = vld [vmem:[%s318 + $0xb8] sm:$0xff]
        %v1323 = vld [vmem:[%s318 + $0xc0] sm:$0xff]
        %v1324 = vld [vmem:[%s318 + $0xc8] sm:$0xff]
        %v1325 = vld [vmem:[%s318 + $0xd0] sm:$0xff]
        %v1326 = vld [vmem:[%s318 + $0xd8] sm:$0xff]
        %v1327 = vld [vmem:[%s318 + $0xe0] sm:$0xff]
        %v1328 = vld [vmem:[%s318 + $0xe8] sm:$0xff]
        %v1329 = vld [vmem:[%s318 + $0xf0] sm:$0xff]
        %v1330 = vld [vmem:[%s318 + $0xf8] sm:$0xff]
        %v1331 = vld [vmem:[%s318 + $0x100] sm:$0xff]
        %v1332 = vld [vmem:[%s318 + $0x108] sm:$0xff]
        %v1333 = vld [vmem:[%s318 + $0x110] sm:$0xff]
        %v1334 = vld [vmem:[%s318 + $0x118] sm:$0xff]
        %v1335 = vld [vmem:[%s318 + $0x120] sm:$0xff]
        %v1336 = vld [vmem:[%s318 + $0x128] sm:$0xff]
        %v1337 = vld [vmem:[%s318 + $0x130] sm:$0xff]
        %v1338 = vld [vmem:[%s318 + $0x138] sm:$0xff]
        %v1339 = vld [vmem:[%s318 + $0x140] sm:$0xff]
        %v1340 = vld [vmem:[%s318 + $0x148] sm:$0xff]
        %v1341 = vld [vmem:[%s318 + $0x150] sm:$0xff]
        %v1342 = vld [vmem:[%s318 + $0x158] sm:$0xff]
        %v1343 = vld [vmem:[%s318 + $0x160] sm:$0xff]
        %v1344 = vld [vmem:[%s318 + $0x168] sm:$0xff]
        %v1345 = vld [vmem:[%s318 + $0x170] sm:$0xff]
        %v1346 = vld [vmem:[%s318 + $0x178] sm:$0xff]
        %v1347 = vld [vmem:[%s318 + $0x180] sm:$0xff]
        %v1348 = vld [vmem:[%s318 + $0x188] sm:$0xff]
        %v1349 = vld [vmem:[%s318 + $0x190] sm:$0xff]
        %v1350 = vld [vmem:[%s318 + $0x198] sm:$0xff]
        %v1351 = vld [vmem:[%s318 + $0x1a0] sm:$0xff]
        %v1352 = vld [vmem:[%s318 + $0x1a8] sm:$0xff]
        %v1353 = vld [vmem:[%s318 + $0x1b0] sm:$0xff]
        %v1354 = vld [vmem:[%s318 + $0x1b8] sm:$0xff]
        %v1355 = vld [vmem:[%s318 + $0x1c0] sm:$0xff]
        %v1356 = vld [vmem:[%s318 + $0x1c8] sm:$0xff]
        %v1357 = vld [vmem:[%s318 + $0x1d0] sm:$0xff]
        %v1358 = vld [vmem:[%s318 + $0x1d8] sm:$0xff]
        %v1359 = vld [vmem:[%s318 + $0x1e0] sm:$0xff]
        %v1360 = vld [vmem:[%s318 + $0x1e8] sm:$0xff]
        %v1361 = vld [vmem:[%s318 + $0x1f0] sm:$0xff]
        %v1362 = vld [vmem:[%s318 + $0x1f8] sm:$0xff]
        %v1363 = vld [vmem:[#allocation2] sm:$0xf]
        %v1364 = vld [vmem:[#allocation2 + $0x4] sm:$0xf]
        %v1365 = vld [vmem:[#allocation2 + $0x8] sm:$0xf]
        %v1366 = vld [vmem:[#allocation2 + $0xc] sm:$0xf]
        %v1367 = vld [vmem:[#allocation2 + $0x10] sm:$0xf]
        %v1368 = vld [vmem:[#allocation2 + $0x14] sm:$0xf]
        %v1369 = vld [vmem:[#allocation2 + $0x18] sm:$0xf]
        %v1370 = vld [vmem:[#allocation2 + $0x1c] sm:$0xf]
        %v1371 = vld [vmem:[#allocation2 + $0x20] sm:$0xf]
        %v1372 = vld [vmem:[#allocation2 + $0x24] sm:$0xf]
        %v1373 = vld [vmem:[#allocation2 + $0x28] sm:$0xf]
        %v1374 = vld [vmem:[#allocation2 + $0x2c] sm:$0xf]
        %v1375 = vld [vmem:[#allocation2 + $0x30] sm:$0xf]
        %v1376 = vld [vmem:[#allocation2 + $0x34] sm:$0xf]
        %v1377 = vld [vmem:[#allocation2 + $0x38] sm:$0xf]
        %v1378 = vld [vmem:[#allocation2 + $0x3c] sm:$0xf]
        %v1379 = vld [vmem:[#allocation2 + $0x40] sm:$0xf]
        %v1380 = vld [vmem:[#allocation2 + $0x44] sm:$0xf]
        %v1381 = vld [vmem:[#allocation2 + $0x48] sm:$0xf]
        %v1382 = vld [vmem:[#allocation2 + $0x4c] sm:$0xf]
        %v1383 = vld [vmem:[#allocation2 + $0x50] sm:$0xf]
        %v1384 = vld [vmem:[#allocation2 + $0x54] sm:$0xf]
        %v1385 = vld [vmem:[#allocation2 + $0x58] sm:$0xf]
        %v1386 = vld [vmem:[#allocation2 + $0x5c] sm:$0xf]
        %v1387 = vld [vmem:[#allocation2 + $0x60] sm:$0xf]
        %v1388 = vld [vmem:[#allocation2 + $0x64] sm:$0xf]
        %v1389 = vld [vmem:[#allocation2 + $0x68] sm:$0xf]
        %v1390 = vld [vmem:[#allocation2 + $0x6c] sm:$0xf]
        %v1391 = vld [vmem:[#allocation2 + $0x70] sm:$0xf]
        %v1392 = vld [vmem:[#allocation2 + $0x74] sm:$0xf]
        %v1393 = vld [vmem:[#allocation2 + $0x78] sm:$0xf]
        %v1394 = vld [vmem:[#allocation2 + $0x7c] sm:$0xf]
        %v1395 = vld [vmem:[#allocation2 + $0x80] sm:$0xf]
        %v1396 = vld [vmem:[#allocation2 + $0x84] sm:$0xf]
        %v1397 = vld [vmem:[#allocation2 + $0x88] sm:$0xf]
        %v1398 = vld [vmem:[#allocation2 + $0x8c] sm:$0xf]
        %v1399 = vld [vmem:[#allocation2 + $0x90] sm:$0xf]
        %v1400 = vld [vmem:[#allocation2 + $0x94] sm:$0xf]
        %v1401 = vld [vmem:[#allocation2 + $0x98] sm:$0xf]
        %v1402 = vld [vmem:[#allocation2 + $0x9c] sm:$0xf]
        %v1403 = vld [vmem:[#allocation2 + $0xa0] sm:$0xf]
        %v1404 = vld [vmem:[#allocation2 + $0xa4] sm:$0xf]
        %v1405 = vld [vmem:[#allocation2 + $0xa8] sm:$0xf]
        %v1406 = vld [vmem:[#allocation2 + $0xac] sm:$0xf]
        %v1407 = vld [vmem:[#allocation2 + $0xb0] sm:$0xf]
        %v1408 = vld [vmem:[#allocation2 + $0xb4] sm:$0xf]
        %v1409 = vld [vmem:[#allocation2 + $0xb8] sm:$0xf]
        %v1410 = vld [vmem:[#allocation2 + $0xbc] sm:$0xf]
        %v1411 = vld [vmem:[#allocation2 + $0xc0] sm:$0xf]
        %v1412 = vld [vmem:[#allocation2 + $0xc4] sm:$0xf]
        %v1413 = vld [vmem:[#allocation2 + $0xc8] sm:$0xf]
        %v1414 = vld [vmem:[#allocation2 + $0xcc] sm:$0xf]
        %v1415 = vld [vmem:[#allocation2 + $0xd0] sm:$0xf]
        %v1416 = vld [vmem:[#allocation2 + $0xd4] sm:$0xf]
        %v1417 = vld [vmem:[#allocation2 + $0xd8] sm:$0xf]
        %v1418 = vld [vmem:[#allocation2 + $0xdc] sm:$0xf]
        %v1419 = vld [vmem:[#allocation2 + $0xe0] sm:$0xf]
        %v1420 = vld [vmem:[#allocation2 + $0xe4] sm:$0xf]
        %v1421 = vld [vmem:[#allocation2 + $0xe8] sm:$0xf]
        %v1422 = vld [vmem:[#allocation2 + $0xec] sm:$0xf]
        %v1423 = vld [vmem:[#allocation2 + $0xf0] sm:$0xf]
        %v1424 = vld [vmem:[#allocation2 + $0xf4] sm:$0xf]
        %v1425 = vld [vmem:[#allocation2 + $0xf8] sm:$0xf]
        %v1426 = vld [vmem:[#allocation2 + $0xfc] sm:$0xf]
        %v1427 = vld [vmem:[%s3] sm:$0x1]
        %v1429 = vlaneseq
        %v1430 = vshrl.u32 %v1429, 7
        %v1431 = vsub.s32 0, %v1430
        %v1432 = vrot.slane %v1427, %v1431
        %v1498 = vunpack.c.l.b16 %v1299
        %v1499 = vunpack.c.h.b16 %v1299
        %v1500 = vunpack.c.l.b16 %v1300
        %v1501 = vunpack.c.h.b16 %v1300
        %v1502 = vunpack.c.l.b16 %v1301
        %v1503 = vunpack.c.h.b16 %v1301
        %v1504 = vunpack.c.l.b16 %v1302
        %v1505 = vunpack.c.h.b16 %v1302
        %v1506 = vunpack.c.l.b16 %v1303
        %v1507 = vunpack.c.h.b16 %v1303
        %v1508 = vunpack.c.l.b16 %v1304
        %v1509 = vunpack.c.h.b16 %v1304
        %v1510 = vunpack.c.l.b16 %v1305
        %v1511 = vunpack.c.h.b16 %v1305
        %v1512 = vunpack.c.l.b16 %v1306
        %v1513 = vunpack.c.h.b16 %v1306
        %v1514 = vunpack.c.l.b16 %v1307
        %v1515 = vunpack.c.h.b16 %v1307
        %v1516 = vunpack.c.l.b16 %v1308
        %v1517 = vunpack.c.h.b16 %v1308
        %v1518 = vunpack.c.l.b16 %v1309
        %v1519 = vunpack.c.h.b16 %v1309
        %v1520 = vunpack.c.l.b16 %v1310
        %v1521 = vunpack.c.h.b16 %v1310
        %v1522 = vunpack.c.l.b16 %v1311
        %v1523 = vunpack.c.h.b16 %v1311
        %v1524 = vunpack.c.l.b16 %v1312
        %v1525 = vunpack.c.h.b16 %v1312
        %v1526 = vunpack.c.l.b16 %v1313
        %v1527 = vunpack.c.h.b16 %v1313
        %v1528 = vunpack.c.l.b16 %v1314
        %v1529 = vunpack.c.h.b16 %v1314
        %v1530 = vunpack.c.l.b16 %v1315
        %v1531 = vunpack.c.h.b16 %v1315
        %v1532 = vunpack.c.l.b16 %v1316
        %v1533 = vunpack.c.h.b16 %v1316
        %v1534 = vunpack.c.l.b16 %v1317
        %v1535 = vunpack.c.h.b16 %v1317
        %v1536 = vunpack.c.l.b16 %v1318
        %v1537 = vunpack.c.h.b16 %v1318
        %v1538 = vunpack.c.l.b16 %v1319
        %v1539 = vunpack.c.h.b16 %v1319
        %v1540 = vunpack.c.l.b16 %v1320
        %v1541 = vunpack.c.h.b16 %v1320
        %v1542 = vunpack.c.l.b16 %v1321
        %v1543 = vunpack.c.h.b16 %v1321
        %v1544 = vunpack.c.l.b16 %v1322
        %v1545 = vunpack.c.h.b16 %v1322
        %v1546 = vunpack.c.l.b16 %v1323
        %v1547 = vunpack.c.h.b16 %v1323
        %v1548 = vunpack.c.l.b16 %v1324
        %v1549 = vunpack.c.h.b16 %v1324
        %v1550 = vunpack.c.l.b16 %v1325
        %v1551 = vunpack.c.h.b16 %v1325
        %v1552 = vunpack.c.l.b16 %v1326
        %v1553 = vunpack.c.h.b16 %v1326
        %v1554 = vunpack.c.l.b16 %v1327
        %v1555 = vunpack.c.h.b16 %v1327
        %v1556 = vunpack.c.l.b16 %v1328
        %v1557 = vunpack.c.h.b16 %v1328
        %v1558 = vunpack.c.l.b16 %v1329
        %v1559 = vunpack.c.h.b16 %v1329
        %v1560 = vunpack.c.l.b16 %v1330
        %v1561 = vunpack.c.h.b16 %v1330
        %v1562 = vunpack.c.l.b16 %v1331
        %v1563 = vunpack.c.h.b16 %v1331
        %v1564 = vunpack.c.l.b16 %v1332
        %v1565 = vunpack.c.h.b16 %v1332
        %v1566 = vunpack.c.l.b16 %v1333
        %v1567 = vunpack.c.h.b16 %v1333
        %v1568 = vunpack.c.l.b16 %v1334
        %v1569 = vunpack.c.h.b16 %v1334
        %v1570 = vunpack.c.l.b16 %v1335
        %v1571 = vunpack.c.h.b16 %v1335
        %v1572 = vunpack.c.l.b16 %v1336
        %v1573 = vunpack.c.h.b16 %v1336
        %v1574 = vunpack.c.l.b16 %v1337
        %v1575 = vunpack.c.h.b16 %v1337
        %v1576 = vunpack.c.l.b16 %v1338
        %v1577 = vunpack.c.h.b16 %v1338
        %v1578 = vunpack.c.l.b16 %v1339
        %v1579 = vunpack.c.h.b16 %v1339
        %v1580 = vunpack.c.l.b16 %v1340
        %v1581 = vunpack.c.h.b16 %v1340
        %v1582 = vunpack.c.l.b16 %v1341
        %v1583 = vunpack.c.h.b16 %v1341
        %v1584 = vunpack.c.l.b16 %v1342
        %v1585 = vunpack.c.h.b16 %v1342
        %v1586 = vunpack.c.l.b16 %v1343
        %v1587 = vunpack.c.h.b16 %v1343
        %v1588 = vunpack.c.l.b16 %v1344
        %v1589 = vunpack.c.h.b16 %v1344
        %v1590 = vunpack.c.l.b16 %v1345
        %v1591 = vunpack.c.h.b16 %v1345
        %v1592 = vunpack.c.l.b16 %v1346
        %v1593 = vunpack.c.h.b16 %v1346
        %v1594 = vunpack.c.l.b16 %v1347
        %v1595 = vunpack.c.h.b16 %v1347
        %v1596 = vunpack.c.l.b16 %v1348
        %v1597 = vunpack.c.h.b16 %v1348
        %v1598 = vunpack.c.l.b16 %v1349
        %v1599 = vunpack.c.h.b16 %v1349
        %v1600 = vunpack.c.l.b16 %v1350
        %v1601 = vunpack.c.h.b16 %v1350
        %v1602 = vunpack.c.l.b16 %v1351
        %v1603 = vunpack.c.h.b16 %v1351
        %v1604 = vunpack.c.l.b16 %v1352
        %v1605 = vunpack.c.h.b16 %v1352
        %v1606 = vunpack.c.l.b16 %v1353
        %v1607 = vunpack.c.h.b16 %v1353
        %v1608 = vunpack.c.l.b16 %v1354
        %v1609 = vunpack.c.h.b16 %v1354
        %v1610 = vunpack.c.l.b16 %v1355
        %v1611 = vunpack.c.h.b16 %v1355
        %v1612 = vunpack.c.l.b16 %v1356
        %v1613 = vunpack.c.h.b16 %v1356
        %v1614 = vunpack.c.l.b16 %v1357
        %v1615 = vunpack.c.h.b16 %v1357
        %v1616 = vunpack.c.l.b16 %v1358
        %v1617 = vunpack.c.h.b16 %v1358
        %v1618 = vunpack.c.l.b16 %v1359
        %v1619 = vunpack.c.h.b16 %v1359
        %v1620 = vunpack.c.l.b16 %v1360
        %v1621 = vunpack.c.h.b16 %v1360
        %v1622 = vunpack.c.l.b16 %v1361
        %v1623 = vunpack.c.h.b16 %v1361
        %v1624 = vunpack.c.l.b16 %v1362
        %v1625 = vunpack.c.h.b16 %v1362
        %v1626 = vpack.c.b16 %v1502, %v1498
        %v1627 = vpack.c.b16 %v1503, %v1499
        %v1628 = vpack.c.b16 %v1504, %v1500
        %v1629 = vpack.c.b16 %v1505, %v1501
        %v1630 = vpack.c.b16 %v1510, %v1506
        %v1631 = vpack.c.b16 %v1511, %v1507
        %v1632 = vpack.c.b16 %v1512, %v1508
        %v1633 = vpack.c.b16 %v1513, %v1509
        %v1634 = vpack.c.b16 %v1518, %v1514
        %v1635 = vpack.c.b16 %v1519, %v1515
        %v1636 = vpack.c.b16 %v1520, %v1516
        %v1637 = vpack.c.b16 %v1521, %v1517
        %v1638 = vpack.c.b16 %v1526, %v1522
        %v1639 = vpack.c.b16 %v1527, %v1523
        %v1640 = vpack.c.b16 %v1528, %v1524
        %v1641 = vpack.c.b16 %v1529, %v1525
        %v1642 = vpack.c.b16 %v1534, %v1530
        %v1643 = vpack.c.b16 %v1535, %v1531
        %v1644 = vpack.c.b16 %v1536, %v1532
        %v1645 = vpack.c.b16 %v1537, %v1533
        %v1646 = vpack.c.b16 %v1542, %v1538
        %v1647 = vpack.c.b16 %v1543, %v1539
        %v1648 = vpack.c.b16 %v1544, %v1540
        %v1649 = vpack.c.b16 %v1545, %v1541
        %v1650 = vpack.c.b16 %v1550, %v1546
        %v1651 = vpack.c.b16 %v1551, %v1547
        %v1652 = vpack.c.b16 %v1552, %v1548
        %v1653 = vpack.c.b16 %v1553, %v1549
        %v1654 = vpack.c.b16 %v1558, %v1554
        %v1655 = vpack.c.b16 %v1559, %v1555
        %v1656 = vpack.c.b16 %v1560, %v1556
        %v1657 = vpack.c.b16 %v1561, %v1557
        %v1658 = vpack.c.b16 %v1566, %v1562
        %v1659 = vpack.c.b16 %v1567, %v1563
        %v1660 = vpack.c.b16 %v1568, %v1564
        %v1661 = vpack.c.b16 %v1569, %v1565
        %v1662 = vpack.c.b16 %v1574, %v1570
        %v1663 = vpack.c.b16 %v1575, %v1571
        %v1664 = vpack.c.b16 %v1576, %v1572
        %v1665 = vpack.c.b16 %v1577, %v1573
        %v1666 = vpack.c.b16 %v1582, %v1578
        %v1667 = vpack.c.b16 %v1583, %v1579
        %v1668 = vpack.c.b16 %v1584, %v1580
        %v1669 = vpack.c.b16 %v1585, %v1581
        %v1670 = vpack.c.b16 %v1590, %v1586
        %v1671 = vpack.c.b16 %v1591, %v1587
        %v1672 = vpack.c.b16 %v1592, %v1588
        %v1673 = vpack.c.b16 %v1593, %v1589
        %v1674 = vpack.c.b16 %v1598, %v1594
        %v1675 = vpack.c.b16 %v1599, %v1595
        %v1676 = vpack.c.b16 %v1600, %v1596
        %v1677 = vpack.c.b16 %v1601, %v1597
        %v1678 = vpack.c.b16 %v1606, %v1602
        %v1679 = vpack.c.b16 %v1607, %v1603
        %v1680 = vpack.c.b16 %v1608, %v1604
        %v1681 = vpack.c.b16 %v1609, %v1605
        %v1682 = vpack.c.b16 %v1614, %v1610
        %v1683 = vpack.c.b16 %v1615, %v1611
        %v1684 = vpack.c.b16 %v1616, %v1612
        %v1685 = vpack.c.b16 %v1617, %v1613
        %v1686 = vpack.c.b16 %v1622, %v1618
        %v1687 = vpack.c.b16 %v1623, %v1619
        %v1688 = vpack.c.b16 %v1624, %v1620
        %v1689 = vpack.c.b16 %v1625, %v1621
        %v1818 = vunpack.c.l.b16 %v1363
        %v1819 = vunpack.c.l.b16 %v1364
        %v1820 = vunpack.c.l.b16 %v1365
        %v1821 = vunpack.c.l.b16 %v1366
        %v1822 = vunpack.c.l.b16 %v1367
        %v1823 = vunpack.c.l.b16 %v1368
        %v1824 = vunpack.c.l.b16 %v1369
        %v1825 = vunpack.c.l.b16 %v1370
        %v1826 = vunpack.c.l.b16 %v1371
        %v1827 = vunpack.c.l.b16 %v1372
        %v1828 = vunpack.c.l.b16 %v1373
        %v1829 = vunpack.c.l.b16 %v1374
        %v1830 = vunpack.c.l.b16 %v1375
        %v1831 = vunpack.c.l.b16 %v1376
        %v1832 = vunpack.c.l.b16 %v1377
        %v1833 = vunpack.c.l.b16 %v1378
        %v1834 = vunpack.c.l.b16 %v1379
        %v1835 = vunpack.c.l.b16 %v1380
        %v1836 = vunpack.c.l.b16 %v1381
        %v1837 = vunpack.c.l.b16 %v1382
        %v1838 = vunpack.c.l.b16 %v1383
        %v1839 = vunpack.c.l.b16 %v1384
        %v1840 = vunpack.c.l.b16 %v1385
        %v1841 = vunpack.c.l.b16 %v1386
        %v1842 = vunpack.c.l.b16 %v1387
        %v1843 = vunpack.c.l.b16 %v1388
        %v1844 = vunpack.c.l.b16 %v1389
        %v1845 = vunpack.c.l.b16 %v1390
        %v1846 = vunpack.c.l.b16 %v1391
        %v1847 = vunpack.c.l.b16 %v1392
        %v1848 = vunpack.c.l.b16 %v1393
        %v1849 = vunpack.c.l.b16 %v1394
        %v1850 = vunpack.c.l.b16 %v1395
        %v1851 = vunpack.c.l.b16 %v1396
        %v1852 = vunpack.c.l.b16 %v1397
        %v1853 = vunpack.c.l.b16 %v1398
        %v1854 = vunpack.c.l.b16 %v1399
        %v1855 = vunpack.c.l.b16 %v1400
        %v1856 = vunpack.c.l.b16 %v1401
        %v1857 = vunpack.c.l.b16 %v1402
        %v1858 = vunpack.c.l.b16 %v1403
        %v1859 = vunpack.c.l.b16 %v1404
        %v1860 = vunpack.c.l.b16 %v1405
        %v1861 = vunpack.c.l.b16 %v1406
        %v1862 = vunpack.c.l.b16 %v1407
        %v1863 = vunpack.c.l.b16 %v1408
        %v1864 = vunpack.c.l.b16 %v1409
        %v1865 = vunpack.c.l.b16 %v1410
        %v1866 = vunpack.c.l.b16 %v1411
        %v1867 = vunpack.c.l.b16 %v1412
        %v1868 = vunpack.c.l.b16 %v1413
        %v1869 = vunpack.c.l.b16 %v1414
        %v1870 = vunpack.c.l.b16 %v1415
        %v1871 = vunpack.c.l.b16 %v1416
        %v1872 = vunpack.c.l.b16 %v1417
        %v1873 = vunpack.c.l.b16 %v1418
        %v1874 = vunpack.c.l.b16 %v1419
        %v1875 = vunpack.c.l.b16 %v1420
        %v1876 = vunpack.c.l.b16 %v1421
        %v1877 = vunpack.c.l.b16 %v1422
        %v1878 = vunpack.c.l.b16 %v1423
        %v1879 = vunpack.c.l.b16 %v1424
        %v1880 = vunpack.c.l.b16 %v1425
        %v1881 = vunpack.c.l.b16 %v1426
        %v1882 = vpack.c.b16 %v1819, %v1818
        %v1883 = vpack.c.b16 %v1821, %v1820
        %v1884 = vpack.c.b16 %v1823, %v1822
        %v1885 = vpack.c.b16 %v1825, %v1824
        %v1886 = vpack.c.b16 %v1827, %v1826
        %v1887 = vpack.c.b16 %v1829, %v1828
        %v1888 = vpack.c.b16 %v1831, %v1830
        %v1889 = vpack.c.b16 %v1833, %v1832
        %v1890 = vpack.c.b16 %v1835, %v1834
        %v1891 = vpack.c.b16 %v1837, %v1836
        %v1892 = vpack.c.b16 %v1839, %v1838
        %v1893 = vpack.c.b16 %v1841, %v1840
        %v1894 = vpack.c.b16 %v1843, %v1842
        %v1895 = vpack.c.b16 %v1845, %v1844
        %v1896 = vpack.c.b16 %v1847, %v1846
        %v1897 = vpack.c.b16 %v1849, %v1848
        %v1898 = vpack.c.b16 %v1851, %v1850
        %v1899 = vpack.c.b16 %v1853, %v1852
        %v1900 = vpack.c.b16 %v1855, %v1854
        %v1901 = vpack.c.b16 %v1857, %v1856
        %v1902 = vpack.c.b16 %v1859, %v1858
        %v1903 = vpack.c.b16 %v1861, %v1860
        %v1904 = vpack.c.b16 %v1863, %v1862
        %v1905 = vpack.c.b16 %v1865, %v1864
        %v1906 = vpack.c.b16 %v1867, %v1866
        %v1907 = vpack.c.b16 %v1869, %v1868
        %v1908 = vpack.c.b16 %v1871, %v1870
        %v1909 = vpack.c.b16 %v1873, %v1872
        %v1910 = vpack.c.b16 %v1875, %v1874
        %v1911 = vpack.c.b16 %v1877, %v1876
        %v1912 = vpack.c.b16 %v1879, %v1878
        %v1913 = vpack.c.b16 %v1881, %v1880
        %1946 = vmatprep.subr.bf16.mxu0 0
        %1947 = vmatpush1.bf16.msra.mxu0 %v1889
        %1948 = vmatprep.subr.bf16.mxu0 0
        %1949 = vmatpush1.bf16.msra.mxu0 %v1888
        %1950 = vmatprep.subr.bf16.mxu0 0
        %1951 = vmatpush1.bf16.msra.mxu0 %v1887
        %1952 = vmatprep.subr.bf16.mxu0 0
        %1953 = vmatpush1.bf16.msra.mxu0 %v1886
        %1954 = vmatprep.subr.bf16.mxu0 0
        %1955 = vmatpush1.bf16.msra.mxu0 %v1885
        %1956 = vmatprep.subr.bf16.mxu0 0
        %1957 = vmatpush1.bf16.msra.mxu0 %v1884
        %1958 = vmatprep.subr.bf16.mxu0 0
        %1959 = vmatpush1.bf16.msra.mxu0 %v1883
        %1960 = vmatprep.subr.bf16.mxu0 0
        %1961 = vmatpush1.bf16.msra.mxu0 %v1882
        %1962 = vmatprep.subr.bf16.mxu0 0
        %1963 = vmatpush2.bf16.msra.mxu0 %v1897
        %1964 = vmatprep.subr.bf16.mxu0 0
        %1965 = vmatpush2.bf16.msra.mxu0 %v1896
        %1966 = vmatprep.subr.bf16.mxu0 0
        %1967 = vmatpush2.bf16.msra.mxu0 %v1895
        %1968 = vmatprep.subr.bf16.mxu0 0
        %1969 = vmatpush2.bf16.msra.mxu0 %v1894
        %1970 = vmatprep.subr.bf16.mxu0 0
        %1971 = vmatpush2.bf16.msra.mxu0 %v1893
        %1972 = vmatprep.subr.bf16.mxu0 0
        %1973 = vmatpush2.bf16.msra.mxu0 %v1892
        %1974 = vmatprep.subr.bf16.mxu0 0
        %1975 = vmatpush2.bf16.msra.mxu0 %v1891
        %1976 = vmatprep.subr.bf16.mxu0 0
        %1977 = vmatpush2.bf16.msra.mxu0 %v1890
        %1978 = vmatprep.mubr.bf16.mxu0 %v1627
        %1979 = vmatmul.mubr.bf16.gmra.mxu0 %v1626
        %v1980 = vpop.f32.mrf.mxu0
        %v1981 = vadd.f32 %v1432, %v1980
        %v1982 = vpop.f32.mrf.mxu0
        %v1983 = vpop.f32.mrf.mxu0
        %v1984 = vadd.f32 %v1432, %v1983
        %v1985 = vpop.f32.mrf.mxu0
        %1986 = vmatprep.mubr.bf16.mxu0 %v1631
        %1987 = vmatmul.mubr.bf16.gmra.mxu0 %v1630
        %v1988 = vpop.f32.mrf.mxu0
        %v1989 = vadd.f32 %v1432, %v1988
        %v1990 = vpop.f32.mrf.mxu0
        %v1991 = vpop.f32.mrf.mxu0
        %v1992 = vadd.f32 %v1432, %v1991
        %v1993 = vpop.f32.mrf.mxu0
        %1994 = vmatprep.mubr.bf16.mxu0 %v1635
        %1995 = vmatmul.mubr.bf16.gmra.mxu0 %v1634
        %v1996 = vpop.f32.mrf.mxu0
        %v1997 = vadd.f32 %v1432, %v1996
        %v1998 = vpop.f32.mrf.mxu0
        %v1999 = vpop.f32.mrf.mxu0
        %v2000 = vadd.f32 %v1432, %v1999
        %v2001 = vpop.f32.mrf.mxu0
        %2002 = vmatprep.mubr.bf16.mxu0 %v1639
        %2003 = vmatmul.mubr.bf16.gmra.mxu0 %v1638
        %v2004 = vpop.f32.mrf.mxu0
        %v2005 = vadd.f32 %v1432, %v2004
        %v2006 = vpop.f32.mrf.mxu0
        %v2007 = vpop.f32.mrf.mxu0
        %v2008 = vadd.f32 %v1432, %v2007
        %v2009 = vpop.f32.mrf.mxu0
        %2010 = vmatprep.mubr.bf16.mxu0 %v1643
        %2011 = vmatmul.mubr.bf16.gmra.mxu0 %v1642
        %v2012 = vpop.f32.mrf.mxu0
        %v2013 = vadd.f32 %v1432, %v2012
        %v2014 = vpop.f32.mrf.mxu0
        %v2015 = vpop.f32.mrf.mxu0
        %v2016 = vadd.f32 %v1432, %v2015
        %v2017 = vpop.f32.mrf.mxu0
        %2018 = vmatprep.mubr.bf16.mxu0 %v1647
        %2019 = vmatmul.mubr.bf16.gmra.mxu0 %v1646
        %v2020 = vpop.f32.mrf.mxu0
        %v2021 = vadd.f32 %v1432, %v2020
        %v2022 = vpop.f32.mrf.mxu0
        %v2023 = vpop.f32.mrf.mxu0
        %v2024 = vadd.f32 %v1432, %v2023
        %v2025 = vpop.f32.mrf.mxu0
        %2026 = vmatprep.mubr.bf16.mxu0 %v1651
        %2027 = vmatmul.mubr.bf16.gmra.mxu0 %v1650
        %v2028 = vpop.f32.mrf.mxu0
        %v2029 = vadd.f32 %v1432, %v2028
        %v2030 = vpop.f32.mrf.mxu0
        %v2031 = vpop.f32.mrf.mxu0
        %v2032 = vadd.f32 %v1432, %v2031
        %v2033 = vpop.f32.mrf.mxu0
        %2034 = vmatprep.mubr.bf16.mxu0 %v1655
        %2035 = vmatmul.mubr.bf16.gmra.mxu0 %v1654
        %v2036 = vpop.f32.mrf.mxu0
        %v2037 = vadd.f32 %v1432, %v2036
        %v2038 = vpop.f32.mrf.mxu0
        %v2039 = vpop.f32.mrf.mxu0
        %v2040 = vadd.f32 %v1432, %v2039
        %v2041 = vpop.f32.mrf.mxu0
        %2042 = vmatprep.mubr.bf16.mxu0 %v1659
        %2043 = vmatmul.mubr.bf16.gmra.mxu0 %v1658
        %v2044 = vpop.f32.mrf.mxu0
        %v2045 = vadd.f32 %v1432, %v2044
        %v2046 = vpop.f32.mrf.mxu0
        %v2047 = vpop.f32.mrf.mxu0
        %v2048 = vadd.f32 %v1432, %v2047
        %v2049 = vpop.f32.mrf.mxu0
        %2050 = vmatprep.mubr.bf16.mxu0 %v1663
        %2051 = vmatmul.mubr.bf16.gmra.mxu0 %v1662
        %v2052 = vpop.f32.mrf.mxu0
        %v2053 = vadd.f32 %v1432, %v2052
        %v2054 = vpop.f32.mrf.mxu0
        %v2055 = vpop.f32.mrf.mxu0
        %v2056 = vadd.f32 %v1432, %v2055
        %v2057 = vpop.f32.mrf.mxu0
        %2058 = vmatprep.mubr.bf16.mxu0 %v1667
        %2059 = vmatmul.mubr.bf16.gmra.mxu0 %v1666
        %v2060 = vpop.f32.mrf.mxu0
        %v2061 = vadd.f32 %v1432, %v2060
        %v2062 = vpop.f32.mrf.mxu0
        %v2063 = vpop.f32.mrf.mxu0
        %v2064 = vadd.f32 %v1432, %v2063
        %v2065 = vpop.f32.mrf.mxu0
        %2066 = vmatprep.mubr.bf16.mxu0 %v1671
        %2067 = vmatmul.mubr.bf16.gmra.mxu0 %v1670
        %v2068 = vpop.f32.mrf.mxu0
        %v2069 = vadd.f32 %v1432, %v2068
        %v2070 = vpop.f32.mrf.mxu0
        %v2071 = vpop.f32.mrf.mxu0
        %v2072 = vadd.f32 %v1432, %v2071
        %v2073 = vpop.f32.mrf.mxu0
        %2074 = vmatprep.mubr.bf16.mxu0 %v1675
        %2075 = vmatmul.mubr.bf16.gmra.mxu0 %v1674
        %v2076 = vpop.f32.mrf.mxu0
        %v2077 = vadd.f32 %v1432, %v2076
        %v2078 = vpop.f32.mrf.mxu0
        %v2079 = vpop.f32.mrf.mxu0
        %v2080 = vadd.f32 %v1432, %v2079
        %v2081 = vpop.f32.mrf.mxu0
        %2082 = vmatprep.mubr.bf16.mxu0 %v1679
        %2083 = vmatmul.mubr.bf16.gmra.mxu0 %v1678
        %v2084 = vpop.f32.mrf.mxu0
        %v2085 = vadd.f32 %v1432, %v2084
        %v2086 = vpop.f32.mrf.mxu0
        %v2087 = vpop.f32.mrf.mxu0
        %v2088 = vadd.f32 %v1432, %v2087
        %v2089 = vpop.f32.mrf.mxu0
        %2090 = vmatprep.mubr.bf16.mxu0 %v1683
        %2091 = vmatmul.mubr.bf16.gmra.mxu0 %v1682
        %v2092 = vpop.f32.mrf.mxu0
        %v2093 = vadd.f32 %v1432, %v2092
        %v2094 = vpop.f32.mrf.mxu0
        %v2095 = vpop.f32.mrf.mxu0
        %v2096 = vadd.f32 %v1432, %v2095
        %v2097 = vpop.f32.mrf.mxu0
        %2098 = vmatprep.mubr.bf16.mxu0 %v1687
        %2099 = vmatmul.mubr.bf16.gmra.mxu0 %v1686
        %v2100 = vpop.f32.mrf.mxu0
        %v2101 = vadd.f32 %v1432, %v2100
        %v2102 = vpop.f32.mrf.mxu0
        %v2103 = vpop.f32.mrf.mxu0
        %v2104 = vadd.f32 %v1432, %v2103
        %v2105 = vpop.f32.mrf.mxu0
        %2106 = vdwg.mxu0
        %2107 = vmatprep.subr.bf16.mxu0 0
        %2108 = vmatpush1.bf16.msra.mxu0 %v1905
        %2109 = vmatprep.subr.bf16.mxu0 0
        %2110 = vmatpush1.bf16.msra.mxu0 %v1904
        %2111 = vmatprep.subr.bf16.mxu0 0
        %2112 = vmatpush1.bf16.msra.mxu0 %v1903
        %2113 = vmatprep.subr.bf16.mxu0 0
        %2114 = vmatpush1.bf16.msra.mxu0 %v1902
        %2115 = vmatprep.subr.bf16.mxu0 0
        %2116 = vmatpush1.bf16.msra.mxu0 %v1901
        %2117 = vmatprep.subr.bf16.mxu0 0
        %2118 = vmatpush1.bf16.msra.mxu0 %v1900
        %2119 = vmatprep.subr.bf16.mxu0 0
        %2120 = vmatpush1.bf16.msra.mxu0 %v1899
        %2121 = vmatprep.subr.bf16.mxu0 0
        %2122 = vmatpush1.bf16.msra.mxu0 %v1898
        %2123 = vmatprep.subr.bf16.mxu0 0
        %2124 = vmatpush2.bf16.msra.mxu0 %v1913
        %2125 = vmatprep.subr.bf16.mxu0 0
        %2126 = vmatpush2.bf16.msra.mxu0 %v1912
        %2127 = vmatprep.subr.bf16.mxu0 0
        %2128 = vmatpush2.bf16.msra.mxu0 %v1911
        %2129 = vmatprep.subr.bf16.mxu0 0
        %2130 = vmatpush2.bf16.msra.mxu0 %v1910
        %2131 = vmatprep.subr.bf16.mxu0 0
        %2132 = vmatpush2.bf16.msra.mxu0 %v1909
        %2133 = vmatprep.subr.bf16.mxu0 0
        %2134 = vmatpush2.bf16.msra.mxu0 %v1908
        %2135 = vmatprep.subr.bf16.mxu0 0
        %2136 = vmatpush2.bf16.msra.mxu0 %v1907
        %2137 = vmatprep.subr.bf16.mxu0 0
        %2138 = vmatpush2.bf16.msra.mxu0 %v1906
        %2139 = vmatprep.mubr.bf16.mxu0 %v1629
        %2140 = vmatmul.mubr.bf16.gmra.mxu0 %v1628
        %v2141 = vpop.f32.mrf.mxu0
        %v2142 = vadd.f32 %v1981, %v2141
        %v2143 = vpop.f32.mrf.mxu0
        %v2144 = vpop.f32.mrf.mxu0
        %v2145 = vadd.f32 %v1984, %v2144
        %v2146 = vpop.f32.mrf.mxu0
        %2147 = vmatprep.mubr.bf16.mxu0 %v1633
        %2148 = vmatmul.mubr.bf16.gmra.mxu0 %v1632
        %v2149 = vpop.f32.mrf.mxu0
        %v2150 = vadd.f32 %v1989, %v2149
        %v2151 = vpop.f32.mrf.mxu0
        %v2152 = vpop.f32.mrf.mxu0
        %v2153 = vadd.f32 %v1992, %v2152
        %v2154 = vpop.f32.mrf.mxu0
        %2155 = vmatprep.mubr.bf16.mxu0 %v1637
        %2156 = vmatmul.mubr.bf16.gmra.mxu0 %v1636
        %v2157 = vpop.f32.mrf.mxu0
        %v2158 = vadd.f32 %v1997, %v2157
        %v2159 = vpop.f32.mrf.mxu0
        %v2160 = vpop.f32.mrf.mxu0
        %v2161 = vadd.f32 %v2000, %v2160
        %v2162 = vpop.f32.mrf.mxu0
        %2163 = vmatprep.mubr.bf16.mxu0 %v1641
        %2164 = vmatmul.mubr.bf16.gmra.mxu0 %v1640
        %v2165 = vpop.f32.mrf.mxu0
        %v2166 = vadd.f32 %v2005, %v2165
        %v2167 = vpop.f32.mrf.mxu0
        %v2168 = vpop.f32.mrf.mxu0
        %v2169 = vadd.f32 %v2008, %v2168
        %v2170 = vpop.f32.mrf.mxu0
        %2171 = vmatprep.mubr.bf16.mxu0 %v1645
        %2172 = vmatmul.mubr.bf16.gmra.mxu0 %v1644
        %v2173 = vpop.f32.mrf.mxu0
        %v2174 = vadd.f32 %v2013, %v2173
        %v2175 = vpop.f32.mrf.mxu0
        %v2176 = vpop.f32.mrf.mxu0
        %v2177 = vadd.f32 %v2016, %v2176
        %v2178 = vpop.f32.mrf.mxu0
        %2179 = vmatprep.mubr.bf16.mxu0 %v1649
        %2180 = vmatmul.mubr.bf16.gmra.mxu0 %v1648
        %v2181 = vpop.f32.mrf.mxu0
        %v2182 = vadd.f32 %v2021, %v2181
        %v2183 = vpop.f32.mrf.mxu0
        %v2184 = vpop.f32.mrf.mxu0
        %v2185 = vadd.f32 %v2024, %v2184
        %v2186 = vpop.f32.mrf.mxu0
        %2187 = vmatprep.mubr.bf16.mxu0 %v1653
        %2188 = vmatmul.mubr.bf16.gmra.mxu0 %v1652
        %v2189 = vpop.f32.mrf.mxu0
        %v2190 = vadd.f32 %v2029, %v2189
        %v2191 = vpop.f32.mrf.mxu0
        %v2192 = vpop.f32.mrf.mxu0
        %v2193 = vadd.f32 %v2032, %v2192
        %v2194 = vpop.f32.mrf.mxu0
        %2195 = vmatprep.mubr.bf16.mxu0 %v1657
        %2196 = vmatmul.mubr.bf16.gmra.mxu0 %v1656
        %v2197 = vpop.f32.mrf.mxu0
        %v2198 = vadd.f32 %v2037, %v2197
        %v2199 = vpop.f32.mrf.mxu0
        %v2200 = vpop.f32.mrf.mxu0
        %v2201 = vadd.f32 %v2040, %v2200
        %v2202 = vpop.f32.mrf.mxu0
        %2203 = vmatprep.mubr.bf16.mxu0 %v1661
        %2204 = vmatmul.mubr.bf16.gmra.mxu0 %v1660
        %v2205 = vpop.f32.mrf.mxu0
        %v2206 = vadd.f32 %v2045, %v2205
        %v2207 = vpop.f32.mrf.mxu0
        %v2208 = vpop.f32.mrf.mxu0
        %v2209 = vadd.f32 %v2048, %v2208
        %v2210 = vpop.f32.mrf.mxu0
        %2211 = vmatprep.mubr.bf16.mxu0 %v1665
        %2212 = vmatmul.mubr.bf16.gmra.mxu0 %v1664
        %v2213 = vpop.f32.mrf.mxu0
        %v2214 = vadd.f32 %v2053, %v2213
        %v2215 = vpop.f32.mrf.mxu0
        %v2216 = vpop.f32.mrf.mxu0
        %v2217 = vadd.f32 %v2056, %v2216
        %v2218 = vpop.f32.mrf.mxu0
        %2219 = vmatprep.mubr.bf16.mxu0 %v1669
        %2220 = vmatmul.mubr.bf16.gmra.mxu0 %v1668
        %v2221 = vpop.f32.mrf.mxu0
        %v2222 = vadd.f32 %v2061, %v2221
        %v2223 = vpop.f32.mrf.mxu0
        %v2224 = vpop.f32.mrf.mxu0
        %v2225 = vadd.f32 %v2064, %v2224
        %v2226 = vpop.f32.mrf.mxu0
        %2227 = vmatprep.mubr.bf16.mxu0 %v1673
        %2228 = vmatmul.mubr.bf16.gmra.mxu0 %v1672
        %v2229 = vpop.f32.mrf.mxu0
        %v2230 = vadd.f32 %v2069, %v2229
        %v2231 = vpop.f32.mrf.mxu0
        %v2232 = vpop.f32.mrf.mxu0
        %v2233 = vadd.f32 %v2072, %v2232
        %v2234 = vpop.f32.mrf.mxu0
        %2235 = vmatprep.mubr.bf16.mxu0 %v1677
        %2236 = vmatmul.mubr.bf16.gmra.mxu0 %v1676
        %v2237 = vpop.f32.mrf.mxu0
        %v2238 = vadd.f32 %v2077, %v2237
        %v2239 = vpop.f32.mrf.mxu0
        %v2240 = vpop.f32.mrf.mxu0
        %v2241 = vadd.f32 %v2080, %v2240
        %v2242 = vpop.f32.mrf.mxu0
        %2243 = vmatprep.mubr.bf16.mxu0 %v1681
        %2244 = vmatmul.mubr.bf16.gmra.mxu0 %v1680
        %v2245 = vpop.f32.mrf.mxu0
        %v2246 = vadd.f32 %v2085, %v2245
        %v2247 = vpop.f32.mrf.mxu0
        %v2248 = vpop.f32.mrf.mxu0
        %v2249 = vadd.f32 %v2088, %v2248
        %v2250 = vpop.f32.mrf.mxu0
        %2251 = vmatprep.mubr.bf16.mxu0 %v1685
        %2252 = vmatmul.mubr.bf16.gmra.mxu0 %v1684
        %v2253 = vpop.f32.mrf.mxu0
        %v2254 = vadd.f32 %v2093, %v2253
        %v2255 = vpop.f32.mrf.mxu0
        %v2256 = vpop.f32.mrf.mxu0
        %v2257 = vadd.f32 %v2096, %v2256
        %v2258 = vpop.f32.mrf.mxu0
        %2259 = vmatprep.mubr.bf16.mxu0 %v1689
        %2260 = vmatmul.mubr.bf16.gmra.mxu0 %v1688
        %v2261 = vpop.f32.mrf.mxu0
        %v2262 = vadd.f32 %v2101, %v2261
        %v2263 = vpop.f32.mrf.mxu0
        %v2264 = vpop.f32.mrf.mxu0
        %v2265 = vadd.f32 %v2104, %v2264
        %v2266 = vpop.f32.mrf.mxu0
        %2267 = vdwg.mxu0
        %vm2268 = vcmp.ge.f32.partialorder %v2142, 0.0
        %vm2269 = vcmp.ge.f32.partialorder %v2145, 0.0
        %vm2270 = vcmp.ge.f32.partialorder %v2150, 0.0
        %vm2271 = vcmp.ge.f32.partialorder %v2153, 0.0
        %vm2272 = vcmp.ge.f32.partialorder %v2158, 0.0
        %vm2273 = vcmp.ge.f32.partialorder %v2161, 0.0
        %vm2274 = vcmp.ge.f32.partialorder %v2166, 0.0
        %vm2275 = vcmp.ge.f32.partialorder %v2169, 0.0
        %vm2276 = vcmp.ge.f32.partialorder %v2174, 0.0
        %vm2277 = vcmp.ge.f32.partialorder %v2177, 0.0
        %vm2278 = vcmp.ge.f32.partialorder %v2182, 0.0
        %vm2279 = vcmp.ge.f32.partialorder %v2185, 0.0
        %vm2280 = vcmp.ge.f32.partialorder %v2190, 0.0
        %vm2281 = vcmp.ge.f32.partialorder %v2193, 0.0
        %vm2282 = vcmp.ge.f32.partialorder %v2198, 0.0
        %vm2283 = vcmp.ge.f32.partialorder %v2201, 0.0
        %vm2284 = vcmp.ge.f32.partialorder %v2206, 0.0
        %vm2285 = vcmp.ge.f32.partialorder %v2209, 0.0
        %vm2286 = vcmp.ge.f32.partialorder %v2214, 0.0
        %vm2287 = vcmp.ge.f32.partialorder %v2217, 0.0
        %vm2288 = vcmp.ge.f32.partialorder %v2222, 0.0
        %vm2289 = vcmp.ge.f32.partialorder %v2225, 0.0
        %vm2290 = vcmp.ge.f32.partialorder %v2230, 0.0
        %vm2291 = vcmp.ge.f32.partialorder %v2233, 0.0
        %vm2292 = vcmp.ge.f32.partialorder %v2238, 0.0
        %vm2293 = vcmp.ge.f32.partialorder %v2241, 0.0
        %vm2294 = vcmp.ge.f32.partialorder %v2246, 0.0
        %vm2295 = vcmp.ge.f32.partialorder %v2249, 0.0
        %vm2296 = vcmp.ge.f32.partialorder %v2254, 0.0
        %vm2297 = vcmp.ge.f32.partialorder %v2257, 0.0
        %vm2298 = vcmp.ge.f32.partialorder %v2262, 0.0
        %vm2299 = vcmp.ge.f32.partialorder %v2265, 0.0
        %v2300 = vmul.f32 %v2142, 0.01
        %v2301 = vmul.f32 %v2145, 0.01
        %v2302 = vmul.f32 %v2150, 0.01
        %v2303 = vmul.f32 %v2153, 0.01
        %v2304 = vmul.f32 %v2158, 0.01
        %v2305 = vmul.f32 %v2161, 0.01
        %v2306 = vmul.f32 %v2166, 0.01
        %v2307 = vmul.f32 %v2169, 0.01
        %v2308 = vmul.f32 %v2174, 0.01
        %v2309 = vmul.f32 %v2177, 0.01
        %v2310 = vmul.f32 %v2182, 0.01
        %v2311 = vmul.f32 %v2185, 0.01
        %v2312 = vmul.f32 %v2190, 0.01
        %v2313 = vmul.f32 %v2193, 0.01
        %v2314 = vmul.f32 %v2198, 0.01
        %v2315 = vmul.f32 %v2201, 0.01
        %v2316 = vmul.f32 %v2206, 0.01
        %v2317 = vmul.f32 %v2209, 0.01
        %v2318 = vmul.f32 %v2214, 0.01
        %v2319 = vmul.f32 %v2217, 0.01
        %v2320 = vmul.f32 %v2222, 0.01
        %v2321 = vmul.f32 %v2225, 0.01
        %v2322 = vmul.f32 %v2230, 0.01
        %v2323 = vmul.f32 %v2233, 0.01
        %v2324 = vmul.f32 %v2238, 0.01
        %v2325 = vmul.f32 %v2241, 0.01
        %v2326 = vmul.f32 %v2246, 0.01
        %v2327 = vmul.f32 %v2249, 0.01
        %v2328 = vmul.f32 %v2254, 0.01
        %v2329 = vmul.f32 %v2257, 0.01
        %v2330 = vmul.f32 %v2262, 0.01
        %v2331 = vmul.f32 %v2265, 0.01
        %v2332 = vsel %vm2268, %v2142, %v2300
        %v2333 = vsel %vm2269, %v2145, %v2301
        %v2334 = vsel %vm2270, %v2150, %v2302
        %v2335 = vsel %vm2271, %v2153, %v2303
        %v2336 = vsel %vm2272, %v2158, %v2304
        %v2337 = vsel %vm2273, %v2161, %v2305
        %v2338 = vsel %vm2274, %v2166, %v2306
        %v2339 = vsel %vm2275, %v2169, %v2307
        %v2340 = vsel %vm2276, %v2174, %v2308
        %v2341 = vsel %vm2277, %v2177, %v2309
        %v2342 = vsel %vm2278, %v2182, %v2310
        %v2343 = vsel %vm2279, %v2185, %v2311
        %v2344 = vsel %vm2280, %v2190, %v2312
        %v2345 = vsel %vm2281, %v2193, %v2313
        %v2346 = vsel %vm2282, %v2198, %v2314
        %v2347 = vsel %vm2283, %v2201, %v2315
        %v2348 = vsel %vm2284, %v2206, %v2316
        %v2349 = vsel %vm2285, %v2209, %v2317
        %v2350 = vsel %vm2286, %v2214, %v2318
        %v2351 = vsel %vm2287, %v2217, %v2319
        %v2352 = vsel %vm2288, %v2222, %v2320
        %v2353 = vsel %vm2289, %v2225, %v2321
        %v2354 = vsel %vm2290, %v2230, %v2322
        %v2355 = vsel %vm2291, %v2233, %v2323
        %v2356 = vsel %vm2292, %v2238, %v2324
        %v2357 = vsel %vm2293, %v2241, %v2325
        %v2358 = vsel %vm2294, %v2246, %v2326
        %v2359 = vsel %vm2295, %v2249, %v2327
        %v2360 = vsel %vm2296, %v2254, %v2328
        %v2361 = vsel %vm2297, %v2257, %v2329
        %v2362 = vsel %vm2298, %v2262, %v2330
        %v2363 = vsel %vm2299, %v2265, %v2331
        %v2364 = vld [vmem:[#allocation3] sm:$0xff]
        %v2365 = vld [vmem:[%s327] sm:$0xff]
        %v2366 = vpack.c.bf16 %v2333, %v2332
        %v2367 = vpack.c.bf16 %v2335, %v2334
        %v2368 = vpack.c.bf16 %v2337, %v2336
        %v2369 = vpack.c.bf16 %v2339, %v2338
        %v2370 = vpack.c.bf16 %v2341, %v2340
        %v2371 = vpack.c.bf16 %v2343, %v2342
        %v2372 = vpack.c.bf16 %v2345, %v2344
        %v2373 = vpack.c.bf16 %v2347, %v2346
        %v2374 = vpack.c.bf16 %v2349, %v2348
        %v2375 = vpack.c.bf16 %v2351, %v2350
        %v2376 = vpack.c.bf16 %v2353, %v2352
        %v2377 = vpack.c.bf16 %v2355, %v2354
        %v2378 = vpack.c.bf16 %v2357, %v2356
        %v2379 = vpack.c.bf16 %v2359, %v2358
        %v2380 = vpack.c.bf16 %v2361, %v2360
        %v2381 = vpack.c.bf16 %v2363, %v2362
        %v2383 = vunpack.c.l.b16 %v2365
        %v2384 = vunpack.c.h.b16 %v2365
        %v2385 = vpack.c.b16 %v2383, %v2383
        %v2386 = vpack.c.b16 %v2384, %v2384
        %2389 = vmatprep.subr.bf16.mxu0 0
        %2390 = vmatpush1.bf16.msra.mxu0 %v2373
        %2391 = vmatprep.subr.bf16.mxu0 0
        %2392 = vmatpush1.bf16.msra.mxu0 %v2372
        %2393 = vmatprep.subr.bf16.mxu0 0
        %2394 = vmatpush1.bf16.msra.mxu0 %v2371
        %2395 = vmatprep.subr.bf16.mxu0 0
        %2396 = vmatpush1.bf16.msra.mxu0 %v2370
        %2397 = vmatprep.subr.bf16.mxu0 0
        %2398 = vmatpush1.bf16.msra.mxu0 %v2369
        %2399 = vmatprep.subr.bf16.mxu0 0
        %2400 = vmatpush1.bf16.msra.mxu0 %v2368
        %2401 = vmatprep.subr.bf16.mxu0 0
        %2402 = vmatpush1.bf16.msra.mxu0 %v2367
        %2403 = vmatprep.subr.bf16.mxu0 0
        %2404 = vmatpush1.bf16.msra.mxu0 %v2366
        %2405 = vmatprep.subr.bf16.mxu0 0
        %2406 = vmatpush2.bf16.msra.mxu0 %v2381
        %2407 = vmatprep.subr.bf16.mxu0 0
        %2408 = vmatpush2.bf16.msra.mxu0 %v2380
        %2409 = vmatprep.subr.bf16.mxu0 0
        %2410 = vmatpush2.bf16.msra.mxu0 %v2379
        %2411 = vmatprep.subr.bf16.mxu0 0
        %2412 = vmatpush2.bf16.msra.mxu0 %v2378
        %2413 = vmatprep.subr.bf16.mxu0 0
        %2414 = vmatpush2.bf16.msra.mxu0 %v2377
        %2415 = vmatprep.subr.bf16.mxu0 0
        %2416 = vmatpush2.bf16.msra.mxu0 %v2376
        %2417 = vmatprep.subr.bf16.mxu0 0
        %2418 = vmatpush2.bf16.msra.mxu0 %v2375
        %2419 = vmatprep.subr.bf16.mxu0 0
        %2420 = vmatpush2.bf16.msra.mxu0 %v2374
        %2421 = vmatprep.mubr.bf16.mxu0 %v2386
        %2422 = vmatmul.mubr.bf16.gmra.mxu0 %v2385
        %v2423 = vpop.f32.mrf.mxu0
        %v2424 = vadd.f32 0.0, %v2423
        %v2425 = vpop.f32.mrf.mxu0
        %v2426 = vpop.f32.mrf.mxu0
        %v2427 = vpop.f32.mrf.mxu0
        %2428 = vdwg.mxu0
        %v2429 = vadd.f32 %v2364, %v2424
        %2430 = vst [vmem:[#allocation3] sm:$0xff] %v2429
        %p2431 = scmp.eq.s32.totalorder %s21, 1
        // Predicated region
        $region73: #{tpu_custom_call.1} parent=47 // pred_check
          %p2432 = pneg %p2431
        $region74: #{tpu_custom_call.1} parent=47 // pred_check_branch
          %2434 = sbr.rel (%p2432) target = $region76
        $region75: #{tpu_custom_call.1} parent=47 // pred_region
          %v2435 = vld [vmem:[#allocation3] sm:$0xff]
          %v2436 = vld [vmem:[#allocation11] sm:$0xff]
          %v2437 = vld [vmem:[#allocation11 + $0x8] sm:$0xff]
          %v2438 = vld [vmem:[#allocation11 + $0x10] sm:$0xff]
          %v2439 = vld [vmem:[#allocation11 + $0x18] sm:$0xff]
          %v2440 = vld [vmem:[#allocation11 + $0x20] sm:$0xff]
          %v2441 = vld [vmem:[#allocation11 + $0x28] sm:$0xff]
          %v2442 = vld [vmem:[#allocation11 + $0x30] sm:$0xff]
          %v2443 = vld [vmem:[#allocation11 + $0x38] sm:$0xff]
          %v2444 = vld [vmem:[#allocation11 + $0x40] sm:$0xff]
          %v2445 = vld [vmem:[#allocation11 + $0x48] sm:$0xff]
          %v2446 = vld [vmem:[#allocation11 + $0x50] sm:$0xff]
          %v2447 = vld [vmem:[#allocation11 + $0x58] sm:$0xff]
          %v2448 = vld [vmem:[#allocation11 + $0x60] sm:$0xff]
          %v2449 = vld [vmem:[#allocation11 + $0x68] sm:$0xff]
          %v2450 = vld [vmem:[#allocation11 + $0x70] sm:$0xff]
          %v2451 = vld [vmem:[#allocation11 + $0x78] sm:$0xff]
          %v2452 = vld [vmem:[%s6] sm:$0x1]
          %v2454 = vlaneseq
          %v2455 = vshrl.u32 %v2454, 7
          %v2456 = vsub.s32 0, %v2455
          %v2457 = vrot.slane %v2452, %v2456
          %2459 = vmatprep.subr.mxu0 0.0
          %2460 = vmatpush1.msra.mxu0 %v2451
          %2461 = vmatprep.subr.mxu0 0.0
          %2462 = vmatpush1.msra.mxu0 %v2450
          %2463 = vmatprep.subr.mxu0 0.0
          %2464 = vmatpush1.msra.mxu0 %v2449
          %2465 = vmatprep.subr.mxu0 0.0
          %2466 = vmatpush1.msra.mxu0 %v2448
          %2467 = vmatprep.subr.mxu0 0.0
          %2468 = vmatpush1.msra.mxu0 %v2447
          %2469 = vmatprep.subr.mxu0 0.0
          %2470 = vmatpush1.msra.mxu0 %v2446
          %2471 = vmatprep.subr.mxu0 0.0
          %2472 = vmatpush1.msra.mxu0 %v2445
          %2473 = vmatprep.subr.mxu0 0.0
          %2474 = vmatpush1.msra.mxu0 %v2444
          %2475 = vmatprep.subr.mxu0 0.0
          %2476 = vmatpush1.msra.mxu0 %v2443
          %2477 = vmatprep.subr.mxu0 0.0
          %2478 = vmatpush1.msra.mxu0 %v2442
          %2479 = vmatprep.subr.mxu0 0.0
          %2480 = vmatpush1.msra.mxu0 %v2441
          %2481 = vmatprep.subr.mxu0 0.0
          %2482 = vmatpush1.msra.mxu0 %v2440
          %2483 = vmatprep.subr.mxu0 0.0
          %2484 = vmatpush1.msra.mxu0 %v2439
          %2485 = vmatprep.subr.mxu0 0.0
          %2486 = vmatpush1.msra.mxu0 %v2438
          %2487 = vmatprep.subr.mxu0 0.0
          %2488 = vmatpush1.msra.mxu0 %v2437
          %2489 = vmatprep.subr.mxu0 0.0
          %2490 = vmatpush1.msra.mxu0 %v2436
          %2491 = vmatprep.subr.mxu0 0.0
          %2492 = vmatpush2.msra.mxu0 0.0
          %2493 = vmatprep.subr.mxu0 0.0
          %2494 = vmatpush2.msra.mxu0 0.0
          %2495 = vmatprep.subr.mxu0 0.0
          %2496 = vmatpush2.msra.mxu0 0.0
          %2497 = vmatprep.subr.mxu0 0.0
          %2498 = vmatpush2.msra.mxu0 0.0
          %2499 = vmatprep.subr.mxu0 0.0
          %2500 = vmatpush2.msra.mxu0 0.0
          %2501 = vmatprep.subr.mxu0 0.0
          %2502 = vmatpush2.msra.mxu0 0.0
          %2503 = vmatprep.subr.mxu0 0.0
          %2504 = vmatpush2.msra.mxu0 0.0
          %2505 = vmatprep.subr.mxu0 0.0
          %2506 = vmatpush2.msra.mxu0 0.0
          %2507 = vmatprep.subr.mxu0 0.0
          %2508 = vmatpush2.msra.mxu0 0.0
          %2509 = vmatprep.subr.mxu0 0.0
          %2510 = vmatpush2.msra.mxu0 0.0
          %2511 = vmatprep.subr.mxu0 0.0
          %2512 = vmatpush2.msra.mxu0 0.0
          %2513 = vmatprep.subr.mxu0 0.0
          %2514 = vmatpush2.msra.mxu0 0.0
          %2515 = vmatprep.subr.mxu0 0.0
          %2516 = vmatpush2.msra.mxu0 0.0
          %2517 = vmatprep.subr.mxu0 0.0
          %2518 = vmatpush2.msra.mxu0 0.0
          %2519 = vmatprep.subr.mxu0 0.0
          %2520 = vmatpush2.msra.mxu0 0.0
          %2521 = vmatprep.subr.mxu0 0.0
          %2522 = vmatpush2.msra.mxu0 0.0
          %2523 = vmatprep.mubr.f32.mxu0 0.0
          %2524 = vmatmul.mubr.f32.gmra.mxu0 %v2435
          %v2525 = vpop.f32.mrf.mxu0
          %v2526 = vadd.f32 %v2457, %v2525
          %v2527 = vpop.f32.mrf.mxu0
          %2528 = vdwg.mxu0
          %v2529 = vlaneseq
          %v2530 = vand.u32 %v2529, 127
          %vm2531 = vcmp.lt.s32.totalorder %v2530, 4
          %v2532 = vsel %vm2531, %v2526, -1e+30
          %2533 = vmax.xlane.f32.xlu0 %v2532
          %v2534 = vpop.xlane.xlu0 %2533
          %v2535 = vsub.f32 %v2532, %v2534
          %v2536 = vmul.f32 %v2535, 1.442695
          %v2537 = vpow.pop %v2536
          %2538 = vadd.xlane.f32.xlu0 %v2537
          %v2539 = vpop.xlane.xlu0 %2538
          %v2540 = vlog2.pop %v2539
          %v2541 = vmul.f32 %v2540, 0.6931472
          %v2542 = vsub.f32 %v2535, %v2541
          %2543 = vst [vmem:[#allocation12] sm:$0xff] %v2542
        $region76: #{tpu_custom_call.1} parent=47 // pred_fallthru
          _
        // Predicated region
        $region77: #{tpu_custom_call.1} parent=47 // pred_check
          %p2544 = pneg %p191
        $region78: #{tpu_custom_call.1} parent=47 // pred_check_branch
          %2546 = sbr.rel (%p2544) target = $region80
        $region79: #{tpu_custom_call.1} parent=47 // pred_region
          %s2548 = ssub.s32 128, 128
          %2549 = vsyncadd [#allocation6], %s2548
          %s2551 = sshll.u32 [#allocation12], 4
          %s2552 = int_to_ptr.vmem [resolvable:$true] %s2551
          %2554 = dma.vmem_to_hbm [thread:$0]  %s2552, 128, %s7, [#allocation6]
        $region80: #{tpu_custom_call.1} parent=47 // pred_fallthru
          _
        // Predicated region
        $region81: #{tpu_custom_call.1} parent=47 // pred_check
          %p2555 = pneg %p191
        $region82: #{tpu_custom_call.1} parent=47 // pred_check_branch
          %2557 = sbr.rel (%p2555) target = $region84
        $region83: #{tpu_custom_call.1} parent=47 // pred_region
          %2558 = dma.done [#allocation6], 128
        $region84: #{tpu_custom_call.1} parent=47 // pred_fallthru
          _
      $region48: #{tpu_custom_call.1} parent=5 // pred_fallthru
        _
      %p2559 = scmp.le.s32.totalorder 2, %s16
      // Predicated region
      $region85: #{tpu_custom_call.1} parent=5 // pred_check
        %p2560 = pneg %p2559
      $region86: #{tpu_custom_call.1} parent=5 // pred_check_branch
        %2562 = sbr.rel (%p2560) target = $region88
      $region87: #{tpu_custom_call.1} parent=5 // pred_region
        %s2563 = ssub.s32 %s16, 2
      $region88: #{tpu_custom_call.1} parent=5 // pred_fallthru
        _
    $region6: #{tpu_custom_call.1} parent=1 // loop_footer
      %s20 = sadd.s32 1, %s16
    $region7: #{tpu_custom_call.1} parent=1 // loop_footer_branch
      %15 = sbr.rel target = $region3
    $region8: #{tpu_custom_call.1} parent=1 // loop_exit
      _
    %2564 = vsyncpa [#allocation5], 1
    %s2565 = scalar_lea.sflag [#allocation5], 1
    %2566 = vsyncpa %s2565, 1
    %2567 = vsyncpa [#allocation8], 1
    %2568 = vsyncpa [#allocation6], 1
    %s2569 = scalar_lea.sflag [#allocation6], 1
    %2570 = vsyncpa %s2569, 1

</llo_original>
